<compile_context>
chip_gen: v5e
topology: v5e:2x2
jax: 0.10.0
libtpu: 0.0.40
codegen_flags: <defaults>
</compile_context>

<pallas_src>
import functools

import jax
import jax.numpy as jnp
from jax import lax
from jax.experimental import pallas as pl
from jax.experimental.pallas import tpu as pltpu

_LANE = 128
_NEG_BIAS = jnp.float32(-1e30)  # padded-vocab bias: never wins the max, exp underflows to 0
_VMEM_LIMIT = 32 * 1024 * 1024  # safe scoped limit on v5e/v6e (128 MiB phys) and v7x (64 MiB)


def _round_up(x, m):
    return ((x + m - 1) // m) * m


def _choose_v_tile(V, E, B, vmem_budget_bytes=_VMEM_LIMIT // 2):
    """Largest multiple-of-128 vocab tile whose working set fits the VMEM budget."""
    tv = min(2048, _round_up(V, _LANE))

    def need(tv_):
        vp = _round_up(V, tv_)
        return 4 * (2 * E * tv_       # double-buffered W^T tile
                    + 2 * tv_         # double-buffered bias tile
                    + 4 * B * tv_     # logits + o_prob output tiles (double-buffered)
                    + B * vp          # resident logits scratch
                    + 2 * B * E)      # gathered-row scratch + resident hidden output

    while tv > _LANE and need(tv) > vmem_budget_bytes:
        tv -= _LANE
    return tv


def prepare_word2vec_params(wy_w, wy_b, v_tile):
    """One-time layout prep (outside the hot path).

    Returns the MXU-native (E, Vp) transposed weight with zero-padded columns and
    the (1, Vp) bias padded with a huge negative value so padded logits are inert
    in the softmax.  In a real model these would simply be stored this way.
    """
    V, E = wy_w.shape
    Vp = _round_up(V, v_tile)
    wt = jnp.zeros((E, Vp), jnp.float32).at[:, :V].set(wy_w.T.astype(jnp.float32))
    bias = jnp.full((1, Vp), _NEG_BIAS, jnp.float32).at[0, :V].set(wy_b.astype(jnp.float32))
    return wt, bias


def _w2v_kernel(ids_ref,        # SMEM (B,)        int32  scalar-prefetched token ids
                embed_hbm,      # ANY  (V, E)      f32    embedding table (stays in HBM)
                wt_ref,         # VMEM (E, TV)     f32    pre-transposed Linear weight tile
                b_ref,          # VMEM (1, TV)     f32    bias tile
                logits_ref,     # VMEM (B, TV)     f32    out: logits tile (streamed, phase 0)
                hidden_ref,     # VMEM (B, E)      f32    out: gathered embeddings (resident)
                oprob_ref,      # VMEM (B, TV)     f32    out: softmax tile (streamed, phase 1)
                hid_vmem,       # VMEM (B, E)      f32    scratch: gathered rows
                logits_vmem,    # VMEM (n_v, B, TV) f32   scratch: resident logits (no recompute)
                m_sc,           # VMEM (B, 1)      f32    scratch: running row max
                l_sc,           # VMEM (B, 1)      f32    scratch: running row sum(exp)
                dma_sem):       # DMA semaphores (B,)
    phase = pl.program_id(0)    # 0: logits + online stats, 1: normalize -> o_prob
    k = pl.program_id(1)        # V-tile index
    B, E = hid_vmem.shape
    V = embed_hbm.shape[0]

    # ---- One-time prologue (first grid step): DMA-gather the B embedding rows.
    @pl.when((phase == 0) & (k == 0))
    def _():
        # Read (and clip) all ids from SMEM *before* any .wait() so the scalar
        # loads are not serialized behind DMA completions.  OOB ids are clamped
        # (no HW bounds check on TPU); PyTorch would raise instead.
        rows = [jnp.clip(ids_ref[i], 0, V - 1) for i in range(B)]
        copies = [
            pltpu.make_async_copy(embed_hbm.at[pl.ds(rows[i], 1)],
                                  hid_vmem.at[pl.ds(i, 1)],
                                  dma_sem.at[i])
            for i in range(B)
        ]
        for cp in copies:
            cp.start()
        for cp in copies:
            cp.wait()
        hidden_ref[...] = hid_vmem[...]           # single unmasked (B, E) store
        m_sc[...] = jnp.full_like(m_sc, -jnp.inf)
        l_sc[...] = jnp.zeros_like(l_sc)

    # ---- Phase 0: logits tile on the MXU + online (max, sum-of-exp) stats. ----
    @pl.when(phase == 0)
    def _():
        logits = lax.dot_general(
            hid_vmem[...], wt_ref[...],
            dimension_numbers=(((1,), (0,)), ((), ())),
            preferred_element_type=jnp.float32,
        ) + b_ref[...]
        logits_ref[...] = logits                  # streamed out (only in phase 0)
        logits_vmem[k] = logits                   # resident copy -> no phase-1 recompute

        m_prev = m_sc[...]
        m_new = jnp.maximum(m_prev, jnp.max(logits, axis=1, keepdims=True))
        alpha = jnp.exp(m_prev - m_new)           # 0 on the first tile
        l_sc[...] = alpha * l_sc[...] + jnp.sum(jnp.exp(logits - m_new),
                                                axis=1, keepdims=True)
        m_sc[...] = m_new

    # ---- Phase 1: normalize from the resident logits (no weight DMA, no MXU). ----
    @pl.when(phase == 1)
    def _():
        inv_l = pl.reciprocal(l_sc[...], approx=False)   # exact reciprocal
        oprob_ref[...] = jnp.exp(logits_vmem[k] - m_sc[...]) * inv_l


@functools.partial(jax.jit, static_argnames=("v_tile",))
def word2vec_forward(ids, embed_w, wt_pad, bias_pad, *, v_tile):
    """ids (B,) int; embed_w (V,E) f32; wt_pad (E,Vp) f32; bias_pad (1,Vp) f32."""
    B = ids.shape[0]
    V, E = embed_w.shape
    Vp = wt_pad.shape[1]
    n_v = Vp // v_tile
    last = n_v - 1
    ids32 = ids.astype(jnp.int32)

    # Phase-1 steps touch no weight/bias and must not write back stale logits
    # buffers, so pin those block indices to the last phase-0 block during p==1.
    def _stream_then_pin(p, k, ids_):
        return (0, jnp.where(p == 0, k, last))

    def _pin_then_stream(p, k, ids_):
        return (0, jnp.where(p == 0, 0, k))

    grid_spec = pltpu.PrefetchScalarGridSpec(
        num_scalar_prefetch=1,                    # ids -> SMEM, fed to index_maps
        grid=(2, n_v),                            # (phase, V-tile); phase is the slow axis
        in_specs=[
            pl.BlockSpec(memory_space=pl.ANY),    # embedding table stays in HBM
            pl.BlockSpec((E, v_tile), _stream_then_pin),   # W^T tile (streamed once)
            pl.BlockSpec((1, v_tile), _stream_then_pin),   # bias tile (streamed once)
        ],
        out_specs=(
            pl.BlockSpec((B, v_tile), _stream_then_pin),   # logits (written in phase 0)
            pl.BlockSpec((B, E),      lambda p, k, ids_: (0, 0)),  # hidden (resident)
            pl.BlockSpec((B, v_tile), _pin_then_stream),   # o_prob (written in phase 1)
        ),
        scratch_shapes=[
            pltpu.VMEM((B, E), jnp.float32),           # gathered embedding rows
            pltpu.VMEM((n_v, B, v_tile), jnp.float32), # resident logits
            pltpu.VMEM((B, 1), jnp.float32),           # running max
            pltpu.VMEM((B, 1), jnp.float32),           # running sum(exp)
            pltpu.SemaphoreType.DMA((B,)),             # one sem per gathered row
        ],
    )

    out_shapes = (
        jax.ShapeDtypeStruct((B, Vp), jnp.float32),   # logits (padded)
        jax.ShapeDtypeStruct((B, E), jnp.float32),    # hidden
        jax.ShapeDtypeStruct((B, Vp), jnp.float32),   # o_prob (padded)
    )

    logits_pad, hidden, oprob_pad = pl.pallas_call(
        _w2v_kernel,
        out_shape=out_shapes,
        grid_spec=grid_spec,
        compiler_params=pltpu.CompilerParams(
            # Both axes carry dependences (phase ordering / softmax reduction).
            dimension_semantics=("arbitrary", "arbitrary"),
            vmem_limit_bytes=_VMEM_LIMIT,
        ),
    )(ids32, embed_w, wt_pad, bias_pad)

    # Drop the padded vocab columns (no-op when V is already a tile multiple).
    return logits_pad[:, :V], hidden, oprob_pad[:, :V]


if __name__ == "__main__":
    # Small shapes consistent with the module's constructor.
    vocab_size = 256
    embedding_size = 128
    embed_init_range = 0.1
    batch = 8

    key = jax.random.PRNGKey(0)
    k1, k2, k3, k4 = jax.random.split(key, 4)

    # Parameter init mirroring the module's __init__:
    #   embed.weight ~ U(-r, r), wy.weight ~ U(-r, r),
    #   wy.bias keeps nn.Linear's default U(-1/sqrt(E), 1/sqrt(E)).
    embed_w = jax.random.uniform(
        k1, (vocab_size, embedding_size), jnp.float32,
        -embed_init_range, embed_init_range)
    wy_w = jax.random.uniform(
        k2, (vocab_size, embedding_size), jnp.float32,
        -embed_init_range, embed_init_range)
    bound = 1.0 / (embedding_size ** 0.5)
    wy_b = jax.random.uniform(k3, (vocab_size,), jnp.float32, -bound, bound)

    ids = jax.random.randint(k4, (batch,), 0, vocab_size, dtype=jnp.int32)

    # One-time layout prep (outside the jitted hot path).
    v_tile = _choose_v_tile(vocab_size, embedding_size, batch)
    wt_pad, bias_pad = prepare_word2vec_params(wy_w, wy_b, v_tile)

    logits, hidden, o_prob = word2vec_forward(
        ids, embed_w, wt_pad, bias_pad, v_tile=v_tile)
    jax.block_until_ready((logits, hidden, o_prob))

    # Pure-JAX reference check of the torch forward semantics.
    ref_hidden = embed_w[ids]
    ref_logits = ref_hidden @ wy_w.T + wy_b
    ref_prob = jax.nn.softmax(ref_logits, axis=1)
    assert logits.shape == (batch, vocab_size) and logits.ndim == 2
    assert jnp.allclose(hidden, ref_hidden, atol=1e-6)
    assert jnp.allclose(logits, ref_logits, atol=1e-4)
    assert jnp.allclose(o_prob, ref_prob, atol=1e-5)

    print("KERNEL_OK")
</pallas_src>

<mosaic_0001>
module attributes {stable_mosaic.version = 11 : i64} {
  func.func @_w2v_kernel(%arg0: i32, %arg1: i32, %arg2: memref<8xi32, #tpu.memory_space<smem>>, %arg3: memref<256x128xf32, #tpu.memory_space<any>>, %arg4: memref<128x256xf32, #tpu.memory_space<vmem>>, %arg5: memref<1x256xf32, #tpu.memory_space<vmem>>, %arg6: memref<8x256xf32, #tpu.memory_space<vmem>>, %arg7: memref<8x128xf32, #tpu.memory_space<vmem>>, %arg8: memref<8x256xf32, #tpu.memory_space<vmem>>, %arg9: memref<8x128xf32, #tpu.memory_space<vmem>>, %arg10: memref<1x8x256xf32, #tpu.memory_space<vmem>>, %arg11: memref<8x1xf32, #tpu.memory_space<vmem>>, %arg12: memref<8x1xf32, #tpu.memory_space<vmem>>, %arg13: memref<8x!tpu.dma_semaphore, #tpu.memory_space<semaphore_mem>>) attributes {dimension_semantics = [#tpu.dimension_semantics<arbitrary>, #tpu.dimension_semantics<arbitrary>], iteration_bounds = array<i64: 2, 1>, scalar_prefetch = 1 : i64, scratch_operands = 5 : i64, tpu.core_type = #tpu.core_type<tc>, window_params = [{}, {transform_indices = @transform_1, window_bounds = array<i64: 128, 256>}, {transform_indices = @transform_2, window_bounds = array<i64: 1, 256>}, {transform_indices = @transform_3, window_bounds = array<i64: 8, 256>}, {pipeline_mode = #tpu.pipeline_mode<synchronous>, transform_indices = @transform_4, window_bounds = array<i64: 8, 128>}, {transform_indices = @transform_5, window_bounds = array<i64: 8, 256>}]} {
    %c0_i32 = arith.constant 0 : i32
    %0 = arith.cmpi eq, %arg0, %c0_i32 : i32
    %c0_i32_0 = arith.constant 0 : i32
    %1 = arith.cmpi eq, %arg1, %c0_i32_0 : i32
    %2 = arith.andi %0, %1 : i1
    %3 = arith.extui %2 : i1 to i32
    %c0_i32_1 = arith.constant 0 : i32
    %4 = arith.cmpi ne, %3, %c0_i32_1 : i32
    scf.if %4 {
      %c0 = arith.constant 0 : index
      %11 = memref.load %arg2[%c0] : memref<8xi32, #tpu.memory_space<smem>>
      %c0_i32_5 = arith.constant 0 : i32
      %c255_i32 = arith.constant 255 : i32
      %12 = arith.maxsi %c0_i32_5, %11 : i32
      %13 = arith.minsi %c255_i32, %12 : i32
      %c1 = arith.constant 1 : index
      %14 = memref.load %arg2[%c1] : memref<8xi32, #tpu.memory_space<smem>>
      %c0_i32_6 = arith.constant 0 : i32
      %c255_i32_7 = arith.constant 255 : i32
      %15 = arith.maxsi %c0_i32_6, %14 : i32
      %16 = arith.minsi %c255_i32_7, %15 : i32
      %c2 = arith.constant 2 : index
      %17 = memref.load %arg2[%c2] : memref<8xi32, #tpu.memory_space<smem>>
      %c0_i32_8 = arith.constant 0 : i32
      %c255_i32_9 = arith.constant 255 : i32
      %18 = arith.maxsi %c0_i32_8, %17 : i32
      %19 = arith.minsi %c255_i32_9, %18 : i32
      %c3 = arith.constant 3 : index
      %20 = memref.load %arg2[%c3] : memref<8xi32, #tpu.memory_space<smem>>
      %c0_i32_10 = arith.constant 0 : i32
      %c255_i32_11 = arith.constant 255 : i32
      %21 = arith.maxsi %c0_i32_10, %20 : i32
      %22 = arith.minsi %c255_i32_11, %21 : i32
      %c4 = arith.constant 4 : index
      %23 = memref.load %arg2[%c4] : memref<8xi32, #tpu.memory_space<smem>>
      %c0_i32_12 = arith.constant 0 : i32
      %c255_i32_13 = arith.constant 255 : i32
      %24 = arith.maxsi %c0_i32_12, %23 : i32
      %25 = arith.minsi %c255_i32_13, %24 : i32
      %c5 = arith.constant 5 : index
      %26 = memref.load %arg2[%c5] : memref<8xi32, #tpu.memory_space<smem>>
      %c0_i32_14 = arith.constant 0 : i32
      %c255_i32_15 = arith.constant 255 : i32
      %27 = arith.maxsi %c0_i32_14, %26 : i32
      %28 = arith.minsi %c255_i32_15, %27 : i32
      %c6 = arith.constant 6 : index
      %29 = memref.load %arg2[%c6] : memref<8xi32, #tpu.memory_space<smem>>
      %c0_i32_16 = arith.constant 0 : i32
      %c255_i32_17 = arith.constant 255 : i32
      %30 = arith.maxsi %c0_i32_16, %29 : i32
      %31 = arith.minsi %c255_i32_17, %30 : i32
      %c7 = arith.constant 7 : index
      %32 = memref.load %arg2[%c7] : memref<8xi32, #tpu.memory_space<smem>>
      %c0_i32_18 = arith.constant 0 : i32
      %c255_i32_19 = arith.constant 255 : i32
      %33 = arith.maxsi %c0_i32_18, %32 : i32
      %34 = arith.minsi %c255_i32_19, %33 : i32
      %c0_i32_20 = arith.constant 0 : i32
      %c0_i32_21 = arith.constant 0 : i32
      %35 = tpu.memref_slice %arg3[%13, %c0_i32_21] : memref<256x128xf32, #tpu.memory_space<any>> -> memref<1x128xf32, #tpu.memory_space<any>>
      %c0_i32_22 = arith.constant 0 : i32
      %c0_i32_23 = arith.constant 0 : i32
      %36 = tpu.memref_slice %arg9[%c0_i32_22, %c0_i32_23] : memref<8x128xf32, #tpu.memory_space<vmem>> -> memref<1x128xf32, #tpu.memory_space<vmem>>
      %37 = tpu.memref_slice %arg13[%c0_i32_20] : memref<8x!tpu.dma_semaphore, #tpu.memory_space<semaphore_mem>> -> memref<1x!tpu.dma_semaphore, #tpu.memory_space<semaphore_mem>>
      %38 = tpu.memref_squeeze %37 : memref<1x!tpu.dma_semaphore, #tpu.memory_space<semaphore_mem>> -> memref<!tpu.dma_semaphore, #tpu.memory_space<semaphore_mem>>
      tpu.enqueue_dma source(%35 : memref<1x128xf32, #tpu.memory_space<any>>) target(%36 : memref<1x128xf32, #tpu.memory_space<vmem>>) target_semaphore(%38 : memref<!tpu.dma_semaphore, #tpu.memory_space<semaphore_mem>>)
      %c1_i32_24 = arith.constant 1 : i32
      %c0_i32_25 = arith.constant 0 : i32
      %39 = tpu.memref_slice %arg3[%16, %c0_i32_25] : memref<256x128xf32, #tpu.memory_space<any>> -> memref<1x128xf32, #tpu.memory_space<any>>
      %c1_i32_26 = arith.constant 1 : i32
      %c0_i32_27 = arith.constant 0 : i32
      %40 = tpu.memref_slice %arg9[%c1_i32_26, %c0_i32_27] : memref<8x128xf32, #tpu.memory_space<vmem>> -> memref<1x128xf32, #tpu.memory_space<vmem>>
      %41 = tpu.memref_slice %arg13[%c1_i32_24] : memref<8x!tpu.dma_semaphore, #tpu.memory_space<semaphore_mem>> -> memref<1x!tpu.dma_semaphore, #tpu.memory_space<semaphore_mem>>
      %42 = tpu.memref_squeeze %41 : memref<1x!tpu.dma_semaphore, #tpu.memory_space<semaphore_mem>> -> memref<!tpu.dma_semaphore, #tpu.memory_space<semaphore_mem>>
      tpu.enqueue_dma source(%39 : memref<1x128xf32, #tpu.memory_space<any>>) target(%40 : memref<1x128xf32, #tpu.memory_space<vmem>>) target_semaphore(%42 : memref<!tpu.dma_semaphore, #tpu.memory_space<semaphore_mem>>)
      %c2_i32 = arith.constant 2 : i32
      %c0_i32_28 = arith.constant 0 : i32
      %43 = tpu.memref_slice %arg3[%19, %c0_i32_28] : memref<256x128xf32, #tpu.memory_space<any>> -> memref<1x128xf32, #tpu.memory_space<any>>
      %c2_i32_29 = arith.constant 2 : i32
      %c0_i32_30 = arith.constant 0 : i32
      %44 = tpu.memref_slice %arg9[%c2_i32_29, %c0_i32_30] : memref<8x128xf32, #tpu.memory_space<vmem>> -> memref<1x128xf32, #tpu.memory_space<vmem>>
      %45 = tpu.memref_slice %arg13[%c2_i32] : memref<8x!tpu.dma_semaphore, #tpu.memory_space<semaphore_mem>> -> memref<1x!tpu.dma_semaphore, #tpu.memory_space<semaphore_mem>>
      %46 = tpu.memref_squeeze %45 : memref<1x!tpu.dma_semaphore, #tpu.memory_space<semaphore_mem>> -> memref<!tpu.dma_semaphore, #tpu.memory_space<semaphore_mem>>
      tpu.enqueue_dma source(%43 : memref<1x128xf32, #tpu.memory_space<any>>) target(%44 : memref<1x128xf32, #tpu.memory_space<vmem>>) target_semaphore(%46 : memref<!tpu.dma_semaphore, #tpu.memory_space<semaphore_mem>>)
      %c3_i32 = arith.constant 3 : i32
      %c0_i32_31 = arith.constant 0 : i32
      %47 = tpu.memref_slice %arg3[%22, %c0_i32_31] : memref<256x128xf32, #tpu.memory_space<any>> -> memref<1x128xf32, #tpu.memory_space<any>>
      %c3_i32_32 = arith.constant 3 : i32
      %c0_i32_33 = arith.constant 0 : i32
      %48 = tpu.memref_slice %arg9[%c3_i32_32, %c0_i32_33] : memref<8x128xf32, #tpu.memory_space<vmem>> -> memref<1x128xf32, #tpu.memory_space<vmem>>
      %49 = tpu.memref_slice %arg13[%c3_i32] : memref<8x!tpu.dma_semaphore, #tpu.memory_space<semaphore_mem>> -> memref<1x!tpu.dma_semaphore, #tpu.memory_space<semaphore_mem>>
      %50 = tpu.memref_squeeze %49 : memref<1x!tpu.dma_semaphore, #tpu.memory_space<semaphore_mem>> -> memref<!tpu.dma_semaphore, #tpu.memory_space<semaphore_mem>>
      tpu.enqueue_dma source(%47 : memref<1x128xf32, #tpu.memory_space<any>>) target(%48 : memref<1x128xf32, #tpu.memory_space<vmem>>) target_semaphore(%50 : memref<!tpu.dma_semaphore, #tpu.memory_space<semaphore_mem>>)
      %c4_i32 = arith.constant 4 : i32
      %c0_i32_34 = arith.constant 0 : i32
      %51 = tpu.memref_slice %arg3[%25, %c0_i32_34] : memref<256x128xf32, #tpu.memory_space<any>> -> memref<1x128xf32, #tpu.memory_space<any>>
      %c4_i32_35 = arith.constant 4 : i32
      %c0_i32_36 = arith.constant 0 : i32
      %52 = tpu.memref_slice %arg9[%c4_i32_35, %c0_i32_36] : memref<8x128xf32, #tpu.memory_space<vmem>> -> memref<1x128xf32, #tpu.memory_space<vmem>>
      %53 = tpu.memref_slice %arg13[%c4_i32] : memref<8x!tpu.dma_semaphore, #tpu.memory_space<semaphore_mem>> -> memref<1x!tpu.dma_semaphore, #tpu.memory_space<semaphore_mem>>
      %54 = tpu.memref_squeeze %53 : memref<1x!tpu.dma_semaphore, #tpu.memory_space<semaphore_mem>> -> memref<!tpu.dma_semaphore, #tpu.memory_space<semaphore_mem>>
      tpu.enqueue_dma source(%51 : memref<1x128xf32, #tpu.memory_space<any>>) target(%52 : memref<1x128xf32, #tpu.memory_space<vmem>>) target_semaphore(%54 : memref<!tpu.dma_semaphore, #tpu.memory_space<semaphore_mem>>)
      %c5_i32 = arith.constant 5 : i32
      %c0_i32_37 = arith.constant 0 : i32
      %55 = tpu.memref_slice %arg3[%28, %c0_i32_37] : memref<256x128xf32, #tpu.memory_space<any>> -> memref<1x128xf32, #tpu.memory_space<any>>
      %c5_i32_38 = arith.constant 5 : i32
      %c0_i32_39 = arith.constant 0 : i32
      %56 = tpu.memref_slice %arg9[%c5_i32_38, %c0_i32_39] : memref<8x128xf32, #tpu.memory_space<vmem>> -> memref<1x128xf32, #tpu.memory_space<vmem>>
      %57 = tpu.memref_slice %arg13[%c5_i32] : memref<8x!tpu.dma_semaphore, #tpu.memory_space<semaphore_mem>> -> memref<1x!tpu.dma_semaphore, #tpu.memory_space<semaphore_mem>>
      %58 = tpu.memref_squeeze %57 : memref<1x!tpu.dma_semaphore, #tpu.memory_space<semaphore_mem>> -> memref<!tpu.dma_semaphore, #tpu.memory_space<semaphore_mem>>
      tpu.enqueue_dma source(%55 : memref<1x128xf32, #tpu.memory_space<any>>) target(%56 : memref<1x128xf32, #tpu.memory_space<vmem>>) target_semaphore(%58 : memref<!tpu.dma_semaphore, #tpu.memory_space<semaphore_mem>>)
      %c6_i32 = arith.constant 6 : i32
      %c0_i32_40 = arith.constant 0 : i32
      %59 = tpu.memref_slice %arg3[%31, %c0_i32_40] : memref<256x128xf32, #tpu.memory_space<any>> -> memref<1x128xf32, #tpu.memory_space<any>>
      %c6_i32_41 = arith.constant 6 : i32
      %c0_i32_42 = arith.constant 0 : i32
      %60 = tpu.memref_slice %arg9[%c6_i32_41, %c0_i32_42] : memref<8x128xf32, #tpu.memory_space<vmem>> -> memref<1x128xf32, #tpu.memory_space<vmem>>
      %61 = tpu.memref_slice %arg13[%c6_i32] : memref<8x!tpu.dma_semaphore, #tpu.memory_space<semaphore_mem>> -> memref<1x!tpu.dma_semaphore, #tpu.memory_space<semaphore_mem>>
      %62 = tpu.memref_squeeze %61 : memref<1x!tpu.dma_semaphore, #tpu.memory_space<semaphore_mem>> -> memref<!tpu.dma_semaphore, #tpu.memory_space<semaphore_mem>>
      tpu.enqueue_dma source(%59 : memref<1x128xf32, #tpu.memory_space<any>>) target(%60 : memref<1x128xf32, #tpu.memory_space<vmem>>) target_semaphore(%62 : memref<!tpu.dma_semaphore, #tpu.memory_space<semaphore_mem>>)
      %c7_i32 = arith.constant 7 : i32
      %c0_i32_43 = arith.constant 0 : i32
      %63 = tpu.memref_slice %arg3[%34, %c0_i32_43] : memref<256x128xf32, #tpu.memory_space<any>> -> memref<1x128xf32, #tpu.memory_space<any>>
      %c7_i32_44 = arith.constant 7 : i32
      %c0_i32_45 = arith.constant 0 : i32
      %64 = tpu.memref_slice %arg9[%c7_i32_44, %c0_i32_45] : memref<8x128xf32, #tpu.memory_space<vmem>> -> memref<1x128xf32, #tpu.memory_space<vmem>>
      %65 = tpu.memref_slice %arg13[%c7_i32] : memref<8x!tpu.dma_semaphore, #tpu.memory_space<semaphore_mem>> -> memref<1x!tpu.dma_semaphore, #tpu.memory_space<semaphore_mem>>
      %66 = tpu.memref_squeeze %65 : memref<1x!tpu.dma_semaphore, #tpu.memory_space<semaphore_mem>> -> memref<!tpu.dma_semaphore, #tpu.memory_space<semaphore_mem>>
      tpu.enqueue_dma source(%63 : memref<1x128xf32, #tpu.memory_space<any>>) target(%64 : memref<1x128xf32, #tpu.memory_space<vmem>>) target_semaphore(%66 : memref<!tpu.dma_semaphore, #tpu.memory_space<semaphore_mem>>)
      %c0_i32_46 = arith.constant 0 : i32
      %c0_i32_47 = arith.constant 0 : i32
      %67 = tpu.memref_slice %arg3[%13, %c0_i32_47] : memref<256x128xf32, #tpu.memory_space<any>> -> memref<1x128xf32, #tpu.memory_space<any>>
      %c0_i32_48 = arith.constant 0 : i32
      %c0_i32_49 = arith.constant 0 : i32
      %68 = tpu.memref_slice %arg9[%c0_i32_48, %c0_i32_49] : memref<8x128xf32, #tpu.memory_space<vmem>> -> memref<1x128xf32, #tpu.memory_space<vmem>>
      %69 = tpu.memref_slice %arg13[%c0_i32_46] : memref<8x!tpu.dma_semaphore, #tpu.memory_space<semaphore_mem>> -> memref<1x!tpu.dma_semaphore, #tpu.memory_space<semaphore_mem>>
      %70 = tpu.memref_squeeze %69 : memref<1x!tpu.dma_semaphore, #tpu.memory_space<semaphore_mem>> -> memref<!tpu.dma_semaphore, #tpu.memory_space<semaphore_mem>>
      tpu.wait_dma2 semaphore(%70 : memref<!tpu.dma_semaphore, #tpu.memory_space<semaphore_mem>>) src(%67 : memref<1x128xf32, #tpu.memory_space<any>>) dst(%68 : memref<1x128xf32, #tpu.memory_space<vmem>>)
      %c1_i32_50 = arith.constant 1 : i32
      %c0_i32_51 = arith.constant 0 : i32
      %71 = tpu.memref_slice %arg3[%16, %c0_i32_51] : memref<256x128xf32, #tpu.memory_space<any>> -> memref<1x128xf32, #tpu.memory_space<any>>
      %c1_i32_52 = arith.constant 1 : i32
      %c0_i32_53 = arith.constant 0 : i32
      %72 = tpu.memref_slice %arg9[%c1_i32_52, %c0_i32_53] : memref<8x128xf32, #tpu.memory_space<vmem>> -> memref<1x128xf32, #tpu.memory_space<vmem>>
      %73 = tpu.memref_slice %arg13[%c1_i32_50] : memref<8x!tpu.dma_semaphore, #tpu.memory_space<semaphore_mem>> -> memref<1x!tpu.dma_semaphore, #tpu.memory_space<semaphore_mem>>
      %74 = tpu.memref_squeeze %73 : memref<1x!tpu.dma_semaphore, #tpu.memory_space<semaphore_mem>> -> memref<!tpu.dma_semaphore, #tpu.memory_space<semaphore_mem>>
      tpu.wait_dma2 semaphore(%74 : memref<!tpu.dma_semaphore, #tpu.memory_space<semaphore_mem>>) src(%71 : memref<1x128xf32, #tpu.memory_space<any>>) dst(%72 : memref<1x128xf32, #tpu.memory_space<vmem>>)
      %c2_i32_54 = arith.constant 2 : i32
      %c0_i32_55 = arith.constant 0 : i32
      %75 = tpu.memref_slice %arg3[%19, %c0_i32_55] : memref<256x128xf32, #tpu.memory_space<any>> -> memref<1x128xf32, #tpu.memory_space<any>>
      %c2_i32_56 = arith.constant 2 : i32
      %c0_i32_57 = arith.constant 0 : i32
      %76 = tpu.memref_slice %arg9[%c2_i32_56, %c0_i32_57] : memref<8x128xf32, #tpu.memory_space<vmem>> -> memref<1x128xf32, #tpu.memory_space<vmem>>
      %77 = tpu.memref_slice %arg13[%c2_i32_54] : memref<8x!tpu.dma_semaphore, #tpu.memory_space<semaphore_mem>> -> memref<1x!tpu.dma_semaphore, #tpu.memory_space<semaphore_mem>>
      %78 = tpu.memref_squeeze %77 : memref<1x!tpu.dma_semaphore, #tpu.memory_space<semaphore_mem>> -> memref<!tpu.dma_semaphore, #tpu.memory_space<semaphore_mem>>
      tpu.wait_dma2 semaphore(%78 : memref<!tpu.dma_semaphore, #tpu.memory_space<semaphore_mem>>) src(%75 : memref<1x128xf32, #tpu.memory_space<any>>) dst(%76 : memref<1x128xf32, #tpu.memory_space<vmem>>)
      %c3_i32_58 = arith.constant 3 : i32
      %c0_i32_59 = arith.constant 0 : i32
      %79 = tpu.memref_slice %arg3[%22, %c0_i32_59] : memref<256x128xf32, #tpu.memory_space<any>> -> memref<1x128xf32, #tpu.memory_space<any>>
      %c3_i32_60 = arith.constant 3 : i32
      %c0_i32_61 = arith.constant 0 : i32
      %80 = tpu.memref_slice %arg9[%c3_i32_60, %c0_i32_61] : memref<8x128xf32, #tpu.memory_space<vmem>> -> memref<1x128xf32, #tpu.memory_space<vmem>>
      %81 = tpu.memref_slice %arg13[%c3_i32_58] : memref<8x!tpu.dma_semaphore, #tpu.memory_space<semaphore_mem>> -> memref<1x!tpu.dma_semaphore, #tpu.memory_space<semaphore_mem>>
      %82 = tpu.memref_squeeze %81 : memref<1x!tpu.dma_semaphore, #tpu.memory_space<semaphore_mem>> -> memref<!tpu.dma_semaphore, #tpu.memory_space<semaphore_mem>>
      tpu.wait_dma2 semaphore(%82 : memref<!tpu.dma_semaphore, #tpu.memory_space<semaphore_mem>>) src(%79 : memref<1x128xf32, #tpu.memory_space<any>>) dst(%80 : memref<1x128xf32, #tpu.memory_space<vmem>>)
      %c4_i32_62 = arith.constant 4 : i32
      %c0_i32_63 = arith.constant 0 : i32
      %83 = tpu.memref_slice %arg3[%25, %c0_i32_63] : memref<256x128xf32, #tpu.memory_space<any>> -> memref<1x128xf32, #tpu.memory_space<any>>
      %c4_i32_64 = arith.constant 4 : i32
      %c0_i32_65 = arith.constant 0 : i32
      %84 = tpu.memref_slice %arg9[%c4_i32_64, %c0_i32_65] : memref<8x128xf32, #tpu.memory_space<vmem>> -> memref<1x128xf32, #tpu.memory_space<vmem>>
      %85 = tpu.memref_slice %arg13[%c4_i32_62] : memref<8x!tpu.dma_semaphore, #tpu.memory_space<semaphore_mem>> -> memref<1x!tpu.dma_semaphore, #tpu.memory_space<semaphore_mem>>
      %86 = tpu.memref_squeeze %85 : memref<1x!tpu.dma_semaphore, #tpu.memory_space<semaphore_mem>> -> memref<!tpu.dma_semaphore, #tpu.memory_space<semaphore_mem>>
      tpu.wait_dma2 semaphore(%86 : memref<!tpu.dma_semaphore, #tpu.memory_space<semaphore_mem>>) src(%83 : memref<1x128xf32, #tpu.memory_space<any>>) dst(%84 : memref<1x128xf32, #tpu.memory_space<vmem>>)
      %c5_i32_66 = arith.constant 5 : i32
      %c0_i32_67 = arith.constant 0 : i32
      %87 = tpu.memref_slice %arg3[%28, %c0_i32_67] : memref<256x128xf32, #tpu.memory_space<any>> -> memref<1x128xf32, #tpu.memory_space<any>>
      %c5_i32_68 = arith.constant 5 : i32
      %c0_i32_69 = arith.constant 0 : i32
      %88 = tpu.memref_slice %arg9[%c5_i32_68, %c0_i32_69] : memref<8x128xf32, #tpu.memory_space<vmem>> -> memref<1x128xf32, #tpu.memory_space<vmem>>
      %89 = tpu.memref_slice %arg13[%c5_i32_66] : memref<8x!tpu.dma_semaphore, #tpu.memory_space<semaphore_mem>> -> memref<1x!tpu.dma_semaphore, #tpu.memory_space<semaphore_mem>>
      %90 = tpu.memref_squeeze %89 : memref<1x!tpu.dma_semaphore, #tpu.memory_space<semaphore_mem>> -> memref<!tpu.dma_semaphore, #tpu.memory_space<semaphore_mem>>
      tpu.wait_dma2 semaphore(%90 : memref<!tpu.dma_semaphore, #tpu.memory_space<semaphore_mem>>) src(%87 : memref<1x128xf32, #tpu.memory_space<any>>) dst(%88 : memref<1x128xf32, #tpu.memory_space<vmem>>)
      %c6_i32_70 = arith.constant 6 : i32
      %c0_i32_71 = arith.constant 0 : i32
      %91 = tpu.memref_slice %arg3[%31, %c0_i32_71] : memref<256x128xf32, #tpu.memory_space<any>> -> memref<1x128xf32, #tpu.memory_space<any>>
      %c6_i32_72 = arith.constant 6 : i32
      %c0_i32_73 = arith.constant 0 : i32
      %92 = tpu.memref_slice %arg9[%c6_i32_72, %c0_i32_73] : memref<8x128xf32, #tpu.memory_space<vmem>> -> memref<1x128xf32, #tpu.memory_space<vmem>>
      %93 = tpu.memref_slice %arg13[%c6_i32_70] : memref<8x!tpu.dma_semaphore, #tpu.memory_space<semaphore_mem>> -> memref<1x!tpu.dma_semaphore, #tpu.memory_space<semaphore_mem>>
      %94 = tpu.memref_squeeze %93 : memref<1x!tpu.dma_semaphore, #tpu.memory_space<semaphore_mem>> -> memref<!tpu.dma_semaphore, #tpu.memory_space<semaphore_mem>>
      tpu.wait_dma2 semaphore(%94 : memref<!tpu.dma_semaphore, #tpu.memory_space<semaphore_mem>>) src(%91 : memref<1x128xf32, #tpu.memory_space<any>>) dst(%92 : memref<1x128xf32, #tpu.memory_space<vmem>>)
      %c7_i32_74 = arith.constant 7 : i32
      %c0_i32_75 = arith.constant 0 : i32
      %95 = tpu.memref_slice %arg3[%34, %c0_i32_75] : memref<256x128xf32, #tpu.memory_space<any>> -> memref<1x128xf32, #tpu.memory_space<any>>
      %c7_i32_76 = arith.constant 7 : i32
      %c0_i32_77 = arith.constant 0 : i32
      %96 = tpu.memref_slice %arg9[%c7_i32_76, %c0_i32_77] : memref<8x128xf32, #tpu.memory_space<vmem>> -> memref<1x128xf32, #tpu.memory_space<vmem>>
      %97 = tpu.memref_slice %arg13[%c7_i32_74] : memref<8x!tpu.dma_semaphore, #tpu.memory_space<semaphore_mem>> -> memref<1x!tpu.dma_semaphore, #tpu.memory_space<semaphore_mem>>
      %98 = tpu.memref_squeeze %97 : memref<1x!tpu.dma_semaphore, #tpu.memory_space<semaphore_mem>> -> memref<!tpu.dma_semaphore, #tpu.memory_space<semaphore_mem>>
      tpu.wait_dma2 semaphore(%98 : memref<!tpu.dma_semaphore, #tpu.memory_space<semaphore_mem>>) src(%95 : memref<1x128xf32, #tpu.memory_space<any>>) dst(%96 : memref<1x128xf32, #tpu.memory_space<vmem>>)
      %c0_78 = arith.constant 0 : index
      %c0_79 = arith.constant 0 : index
      %99 = vector.load %arg9[%c0_78, %c0_79] : memref<8x128xf32, #tpu.memory_space<vmem>>, vector<8x128xf32>
      %c0_80 = arith.constant 0 : index
      %c0_81 = arith.constant 0 : index
      %100 = vector.load %arg7[%c0_80, %c0_81] : memref<8x128xf32, #tpu.memory_space<vmem>>, vector<8x128xf32>
      tpu.vector_store %arg7[%c0_80, %c0_81], %99 {strides = array<i32>} : memref<8x128xf32, #tpu.memory_space<vmem>>, vector<8x128xf32>,
      %cst = arith.constant 0xFF800000 : f32
      %101 = vector.broadcast %cst : f32 to vector<8x1xf32>
      %c0_82 = arith.constant 0 : index
      %c0_83 = arith.constant 0 : index
      %102 = vector.load %arg11[%c0_82, %c0_83] : memref<8x1xf32, #tpu.memory_space<vmem>>, vector<8x1xf32>
      tpu.vector_store %arg11[%c0_82, %c0_83], %101 {strides = array<i32>} : memref<8x1xf32, #tpu.memory_space<vmem>>, vector<8x1xf32>,
      %cst_84 = arith.constant 0.000000e+00 : f32
      %103 = vector.broadcast %cst_84 : f32 to vector<8x1xf32>
      %c0_85 = arith.constant 0 : index
      %c0_86 = arith.constant 0 : index
      %104 = vector.load %arg12[%c0_85, %c0_86] : memref<8x1xf32, #tpu.memory_space<vmem>>, vector<8x1xf32>
      tpu.vector_store %arg12[%c0_85, %c0_86], %103 {strides = array<i32>} : memref<8x1xf32, #tpu.memory_space<vmem>>, vector<8x1xf32>,
    } else {
    }
    %c0_i32_2 = arith.constant 0 : i32
    %5 = arith.cmpi eq, %arg0, %c0_i32_2 : i32
    %6 = arith.extui %5 : i1 to i32
    %c0_i32_3 = arith.constant 0 : i32
    %7 = arith.cmpi ne, %6, %c0_i32_3 : i32
    scf.if %7 {
      %c0 = arith.constant 0 : index
      %c0_5 = arith.constant 0 : index
      %11 = vector.load %arg9[%c0, %c0_5] : memref<8x128xf32, #tpu.memory_space<vmem>>, vector<8x128xf32>
      %c0_6 = arith.constant 0 : index
      %c0_7 = arith.constant 0 : index
      %12 = vector.load %arg4[%c0_6, %c0_7] : memref<128x256xf32, #tpu.memory_space<vmem>>, vector<128x256xf32>
      %cst = arith.constant dense<0.000000e+00> : vector<8x256xf32>
      %13 = tpu.matmul %11, %12, %cst {dimension_numbers = #tpu.dot_dimension_numbers<[1], [0], [0], [1], [0, 0, 1, 1], [], []>} : vector<8x128xf32>, vector<128x256xf32>, vector<8x256xf32> -> vector<8x256xf32>
      %c0_8 = arith.constant 0 : index
      %c0_9 = arith.constant 0 : index
      %14 = vector.load %arg5[%c0_8, %c0_9] : memref<1x256xf32, #tpu.memory_space<vmem>>, vector<1x256xf32>
      %15 = vector.broadcast %14 : vector<1x256xf32> to vector<8x256xf32>
      %16 = arith.addf %13, %15 : vector<8x256xf32>
      %c0_10 = arith.constant 0 : index
      %c0_11 = arith.constant 0 : index
      %17 = vector.load %arg6[%c0_10, %c0_11] : memref<8x256xf32, #tpu.memory_space<vmem>>, vector<8x256xf32>
      tpu.vector_store %arg6[%c0_10, %c0_11], %16 {strides = array<i32>} : memref<8x256xf32, #tpu.memory_space<vmem>>, vector<8x256xf32>,
      %18 = arith.index_cast %arg1 : i32 to index
      %c0_12 = arith.constant 0 : index
      %c0_13 = arith.constant 0 : index
      %19 = vector.load %arg10[%18, %c0_12, %c0_13] : memref<1x8x256xf32, #tpu.memory_space<vmem>>, vector<1x8x256xf32>
      %20 = vector.shape_cast %19 : vector<1x8x256xf32> to vector<8x256xf32>
      %21 = vector.shape_cast %16 : vector<8x256xf32> to vector<1x8x256xf32>
      tpu.vector_store %arg10[%18, %c0_12, %c0_13], %21 {strides = array<i32>} : memref<1x8x256xf32, #tpu.memory_space<vmem>>, vector<1x8x256xf32>,
      %c0_14 = arith.constant 0 : index
      %c0_15 = arith.constant 0 : index
      %22 = vector.load %arg11[%c0_14, %c0_15] : memref<8x1xf32, #tpu.memory_space<vmem>>, vector<8x1xf32>
      %cst_16 = arith.constant dense<0xFF800000> : vector<8xf32>
      %23 = vector.multi_reduction <maximumf>, %16, %cst_16 [1] : vector<8x256xf32> to vector<8xf32>
      %24 = vector.shape_cast %23 : vector<8xf32> to vector<8x1xf32>
      %25 = arith.maximumf %22, %24 : vector<8x1xf32>
      %26 = arith.subf %22, %25 : vector<8x1xf32>
      %27 = math.exp %26 : vector<8x1xf32>
      %c0_17 = arith.constant 0 : index
      %c0_18 = arith.constant 0 : index
      %28 = vector.load %arg12[%c0_17, %c0_18] : memref<8x1xf32, #tpu.memory_space<vmem>>, vector<8x1xf32>
      %29 = arith.mulf %27, %28 : vector<8x1xf32>
      %30 = vector.broadcast %25 : vector<8x1xf32> to vector<8x256xf32>
      %31 = arith.subf %16, %30 : vector<8x256xf32>
      %32 = math.exp %31 : vector<8x256xf32>
      %cst_19 = arith.constant dense<0.000000e+00> : vector<8xf32>
      %33 = vector.multi_reduction <add>, %32, %cst_19 [1] : vector<8x256xf32> to vector<8xf32>
      %34 = vector.shape_cast %33 : vector<8xf32> to vector<8x1xf32>
      %35 = arith.addf %29, %34 : vector<8x1xf32>
      %c0_20 = arith.constant 0 : index
      %c0_21 = arith.constant 0 : index
      %36 = vector.load %arg12[%c0_20, %c0_21] : memref<8x1xf32, #tpu.memory_space<vmem>>, vector<8x1xf32>
      tpu.vector_store %arg12[%c0_20, %c0_21], %35 {strides = array<i32>} : memref<8x1xf32, #tpu.memory_space<vmem>>, vector<8x1xf32>,
      %c0_22 = arith.constant 0 : index
      %c0_23 = arith.constant 0 : index
      %37 = vector.load %arg11[%c0_22, %c0_23] : memref<8x1xf32, #tpu.memory_space<vmem>>, vector<8x1xf32>
      tpu.vector_store %arg11[%c0_22, %c0_23], %25 {strides = array<i32>} : memref<8x1xf32, #tpu.memory_space<vmem>>, vector<8x1xf32>,
    } else {
    }
    %c1_i32 = arith.constant 1 : i32
    %8 = arith.cmpi eq, %arg0, %c1_i32 : i32
    %9 = arith.extui %8 : i1 to i32
    %c0_i32_4 = arith.constant 0 : i32
    %10 = arith.cmpi ne, %9, %c0_i32_4 : i32
    scf.if %10 {
      %c0 = arith.constant 0 : index
      %c0_5 = arith.constant 0 : index
      %11 = vector.load %arg12[%c0, %c0_5] : memref<8x1xf32, #tpu.memory_space<vmem>>, vector<8x1xf32>
      %12 = tpu.reciprocal %11 : vector<8x1xf32> -> vector<8x1xf32>
      %13 = arith.index_cast %arg1 : i32 to index
      %c0_6 = arith.constant 0 : index
      %c0_7 = arith.constant 0 : index
      %14 = vector.load %arg10[%13, %c0_6, %c0_7] : memref<1x8x256xf32, #tpu.memory_space<vmem>>, vector<1x8x256xf32>
      %15 = vector.shape_cast %14 : vector<1x8x256xf32> to vector<8x256xf32>
      %c0_8 = arith.constant 0 : index
      %c0_9 = arith.constant 0 : index
      %16 = vector.load %arg11[%c0_8, %c0_9] : memref<8x1xf32, #tpu.memory_space<vmem>>, vector<8x1xf32>
      %17 = vector.broadcast %16 : vector<8x1xf32> to vector<8x256xf32>
      %18 = arith.subf %15, %17 : vector<8x256xf32>
      %19 = math.exp %18 : vector<8x256xf32>
      %20 = vector.broadcast %12 : vector<8x1xf32> to vector<8x256xf32>
      %21 = arith.mulf %19, %20 : vector<8x256xf32>
      %c0_10 = arith.constant 0 : index
      %c0_11 = arith.constant 0 : index
      %22 = vector.load %arg8[%c0_10, %c0_11] : memref<8x256xf32, #tpu.memory_space<vmem>>, vector<8x256xf32>
      tpu.vector_store %arg8[%c0_10, %c0_11], %21 {strides = array<i32>} : memref<8x256xf32, #tpu.memory_space<vmem>>, vector<8x256xf32>,
    } else {
    }
    return
  }
  func.func @transform_1(%arg0: i32, %arg1: i32, %arg2: memref<8xi32, #tpu.memory_space<smem>>) -> (i32, i32) {
    %c0_i32 = arith.constant 0 : i32
    %0 = arith.cmpi eq, %arg0, %c0_i32 : i32
    %c0_i32_0 = arith.constant 0 : i32
    %1 = arith.select %0, %arg1, %c0_i32_0 : i32
    %c0_i32_1 = arith.constant 0 : i32
    %c0_i32_2 = arith.constant 0 : i32
    return %c0_i32_1, %1 : i32, i32
  }
  func.func @transform_2(%arg0: i32, %arg1: i32, %arg2: memref<8xi32, #tpu.memory_space<smem>>) -> (i32, i32) {
    %c0_i32 = arith.constant 0 : i32
    %0 = arith.cmpi eq, %arg0, %c0_i32 : i32
    %c0_i32_0 = arith.constant 0 : i32
    %1 = arith.select %0, %arg1, %c0_i32_0 : i32
    %c0_i32_1 = arith.constant 0 : i32
    %c0_i32_2 = arith.constant 0 : i32
    return %c0_i32_1, %1 : i32, i32
  }
  func.func @transform_3(%arg0: i32, %arg1: i32, %arg2: memref<8xi32, #tpu.memory_space<smem>>) -> (i32, i32) {
    %c0_i32 = arith.constant 0 : i32
    %0 = arith.cmpi eq, %arg0, %c0_i32 : i32
    %c0_i32_0 = arith.constant 0 : i32
    %1 = arith.select %0, %arg1, %c0_i32_0 : i32
    %c0_i32_1 = arith.constant 0 : i32
    %c0_i32_2 = arith.constant 0 : i32
    return %c0_i32_1, %1 : i32, i32
  }
  func.func @transform_4(%arg0: i32, %arg1: i32, %arg2: memref<8xi32, #tpu.memory_space<smem>>) -> (i32, i32) {
    %c0_i32 = arith.constant 0 : i32
    %c0_i32_0 = arith.constant 0 : i32
    %c0_i32_1 = arith.constant 0 : i32
    return %c0_i32, %c0_i32_0 : i32, i32
  }
  func.func @transform_5(%arg0: i32, %arg1: i32, %arg2: memref<8xi32, #tpu.memory_space<smem>>) -> (i32, i32) {
    %c0_i32 = arith.constant 0 : i32
    %0 = arith.cmpi eq, %arg0, %c0_i32 : i32
    %c0_i32_0 = arith.constant 0 : i32
    %1 = arith.select %0, %c0_i32_0, %arg1 : i32
    %c0_i32_1 = arith.constant 0 : i32
    %c0_i32_2 = arith.constant 0 : i32
    return %c0_i32_1, %1 : i32, i32
  }
}

</mosaic_0001>

<llo_original>
// kernel: word2vec_forward.1
$region0: #{word2vec_forward.1}
  #allocation0 [shape = 'u32[]', space=smem, size = 0x4, offset = 0x4, fixed_abs, tag = 'smem constant byte address 0x4 - core index']
  #allocation1 [shape = 'u32[72,128]{1,0:T(1,128)}', space=vmem, size = 0x9000, scoped, tag = 'internal scratch']
  #allocation2 [shape = 'f32[8,128]{1,0:T(8,128)}', space=vmem, size = 0x1000, scoped, tag = 'scratch operand']
  #allocation3 [shape = 'f32[1,8,256]{2,1,0:T(8,128)}', space=vmem, size = 0x2000, scoped, tag = 'scratch operand']
  #allocation4 [shape = 'f32[8,1]{1,0:T(8,128)}', space=vmem, size = 0x1000, scoped, tag = 'scratch operand']
  #allocation5 [shape = 'f32[8,1]{1,0:T(8,128)}', space=vmem, size = 0x1000, scoped, tag = 'scratch operand']
  #allocation6 [shape = 's32[8]{0}', space=sflag, size = 0x20, scoped, tag = 'scratch operand']
  #allocation7 [shape = 's32[1]{0}', space=sflag, size = 0x4, scoped, tag = 'scoped memory for word2vec_forward.1']
  #allocation8 [shape = 'u8[512]{0}', space=smem, size = 0x200, scoped, tag = 'prefetched SMEM operand 0']
  #allocation16 [shape = 's32[]', space=sflag, size = 0x4, offset = 0, fixed_abs, tag = 'sflag constant byte address 0x0 - dummy sync flag']
  #allocation17 [shape = 's32[]', space=sflag, size = 0x4, offset = 0, fixed_abs, tag = 'sflag constant byte address 0x0 - dummy sync flag']
  #allocation18 [shape = 'u32[]', space=smem, size = 0x4, offset = 0x44, fixed_abs, tag = 'smem constant byte address 0x44 - assertion arg 0']
  #allocation19 [shape = 'u32[]', space=smem, size = 0x4, offset = 0x48, fixed_abs, tag = 'smem constant byte address 0x48 - assertion arg 1']
  #allocation20 [shape = 's32[]', space=sflag, size = 0x4, offset = 0, fixed_abs, tag = 'sflag constant byte address 0x0 - dummy sync flag']
  #allocation21 [shape = 's32[]', space=sflag, size = 0x4, offset = 0, fixed_abs, tag = 'sflag constant byte address 0x0 - dummy sync flag']
  #allocation22 [shape = 's32[]', space=sflag, size = 0x4, offset = 0, fixed_abs, tag = 'sflag constant byte address 0x0 - dummy sync flag']
  #allocation23 [shape = 's32[]', space=sflag, size = 0x4, offset = 0, fixed_abs, tag = 'sflag constant byte address 0x0 - dummy sync flag']
  #allocation24 [shape = 's32[]', space=sflag, size = 0x4, offset = 0, fixed_abs, tag = 'sflag constant byte address 0x0 - dummy sync flag']
  #allocation25 [shape = 's32[]', space=sflag, size = 0x4, offset = 0, fixed_abs, tag = 'sflag constant byte address 0x0 - dummy sync flag']
  #allocation26 [shape = 's32[]', space=sflag, size = 0x4, offset = 0, fixed_abs, tag = 'sflag constant byte address 0x0 - dummy sync flag']
  #allocation27 [shape = 's32[]', space=sflag, size = 0x4, offset = 0, fixed_abs, tag = 'sflag constant byte address 0x0 - dummy sync flag']
  #allocation28 [shape = 's32[]', space=sflag, size = 0x4, offset = 0, fixed_abs, tag = 'sflag constant byte address 0x0 - dummy sync flag']
  #allocation29 [shape = 's32[]', space=sflag, size = 0x4, offset = 0, fixed_abs, tag = 'sflag constant byte address 0x0 - dummy sync flag']
  #allocation30 [shape = 's32[]', space=sflag, size = 0x4, offset = 0, fixed_abs, tag = 'sflag constant byte address 0x0 - dummy sync flag']
  #allocation31 [shape = 's32[]', space=sflag, size = 0x4, offset = 0, fixed_abs, tag = 'sflag constant byte address 0x0 - dummy sync flag']
  #allocation32 [shape = 's32[]', space=sflag, size = 0x4, offset = 0, fixed_abs, tag = 'sflag constant byte address 0x0 - dummy sync flag']
  #allocation33 [shape = 's32[]', space=sflag, size = 0x4, offset = 0, fixed_abs, tag = 'sflag constant byte address 0x0 - dummy sync flag']
  %s0 = inlined_call_operand.hbm [shape: s32[8], index: 0, kind: input, shape index: {}]
  %s1 = inlined_call_operand.hbm [shape: f32[256,128], index: 1, kind: input, shape index: {}]
  %s2 = inlined_call_operand.hbm [shape: f32[128,256], index: 2, kind: input, shape index: {}]
  %s3 = inlined_call_operand.vmem [shape: f32[1,256], index: 3, kind: input, shape index: {}]
  %s4 = inlined_call_operand.hbm [shape: f32[8,256], index: 4, kind: output, shape index: {0}]
  %s5 = inlined_call_operand.hbm [shape: f32[8,128], index: 5, kind: output, shape index: {1}]
  %s6 = inlined_call_operand.hbm [shape: f32[8,256], index: 6, kind: output, shape index: {2}]
  %7 = xla_tuple %s4, %s5, %s6
  %s8 = sld [smem:[#allocation0]]
  $region105: #{word2vec_forward.1} parent=0
    _
  %s10 = ssub.s32 1, %s8
  %s11 = scalar_select 0, %s10, %s8
  %s13 = sshll.u32 %s0, 4
  %s14 = int_to_ptr.hbm [resolvable:$true] %s13
  %16 = dma.hbm_to_smem %s14, 16, [#allocation8], [#allocation7]
  %18 = dma.done [#allocation7], 16
  %19 = sfence
  $region1: #{word2vec_forward.1} parent=0
    #allocation9 [shape = 'u8[262144]{0}', space=vmem, size = 0x40000, scoped, tag = 'input window, operand 2']
    #allocation10 [shape = 's32[2]{0}', space=sflag, size = 0x8, scoped, tag = 'scoped memory for word2vec_forward.1']
    #allocation11 [shape = 's32[2]{0}', space=sflag, size = 0x8, scoped, tag = 'scoped memory for word2vec_forward.1']
    #allocation12 [shape = 'u8[16384]{0}', space=vmem, size = 0x4000, scoped, tag = 'output window, operand 0']
    #allocation13 [shape = 'u8[4096]{0}', space=vmem, size = 0x1000, scoped, tag = 'output window, operand 1, single buffered']
    #allocation14 [shape = 's32[1]{0}', space=sflag, size = 0x4, scoped, tag = 'scoped memory for word2vec_forward.1']
    #allocation15 [shape = 'u8[16384]{0}', space=vmem, size = 0x4000, scoped, tag = 'output window, operand 2']
    %20 = vsyncpa [#allocation10], 0
    %s21 = scalar_lea.sflag [#allocation10], 1
    %22 = vsyncpa %s21, 0
    %23 = vsyncpa [#allocation11], 0
    %s24 = scalar_lea.sflag [#allocation11], 1
    %25 = vsyncpa %s24, 0
    %26 = vsyncpa [#allocation14], 0
    loop: start=0, step=1, limit=4
    $region2: #{word2vec_forward.1} parent=1 // loop_pre_header
      _
    $region3: #{word2vec_forward.1} parent=1 // loop_header
      %s28 = sphi 0, %s32
      %p29 = scmp.ge.s32.totalorder %s28, 4
      %s35 = sphi 0, %s47
      %s36 = sphi 0, %s43
      %s37 = sphi 0, %s35
      %s38 = sphi 0, %s36
      %s39 = sphi 0, %s37
      %s40 = sphi 0, %s38
      %s54 = sphi 0, %s56
      %s57 = sphi 0, %s54
      %s58 = sphi 0, %s57
      %s74 = sphi 0, %s58
      %s84 = sphi 0, %s86
      %s87 = sphi 0, %s84
      %s88 = sphi 0, %s87
      %s104 = sphi 0, %s88
      %s114 = sphi 0, %s116
      %s117 = sphi 0, %s114
      %s118 = sphi 0, %s117
      %s134 = sphi 0, %s118
      %s138 = sphi 0, %s138
      %s140 = sphi 0, %s138
      %s141 = sphi 0, %s140
      %s155 = sphi 0, %s141
      %s165 = sphi 0, %s167
      %s168 = sphi 0, %s165
      %s169 = sphi 0, %s168
      %s185 = sphi 0, %s169
    $region4: #{word2vec_forward.1} parent=1 // loop_header_branch
      %31 = sbr.rel (%p29) target = $region8
    $region5: #{word2vec_forward.1} parent=1 // loop_body
      %s33 = ssub.s32 %s28, 1
      %s34 = ssub.s32 %s28, 2
      %s41 = sadd.s32 1, %s36
      %p42 = scmp.ge.s32.totalorder %s41, 1
      %s43 = scalar_select %p42, 0, %s41
      %s44 = sadd.s32 1, %s35
      %s45 = scalar_select %p42, %s44, %s35
      %p46 = scmp.ge.s32.totalorder %s45, 2
      %s47 = scalar_select %p46, 0, %s45
      %p48 = scmp.eq.s32.totalorder %s35, 0
      %s49 = scalar_select %p48, %s36, 0
      %p50 = scmp.eq.s32.totalorder %s47, 0
      %s51 = scalar_select %p50, %s43, 0
      %s52 = ssub.s32 %s49, %s51
      %p53 = scmp.eq.s32.totalorder %s52, 0
      %s55 = sadd.s32 %s54, 1
      %s56 = scalar_select %p53, %s54, %s55
      %p59 = pneg %p53
      %p60 = scmp.eq.s32.totalorder %s28, 1
      %p61 = por %p59, %p60
      %p62 = scmp.ne.s32.totalorder %s54, %s57
      %p63 = scmp.eq.s32.totalorder %s28, 0
      %p64 = por %p62, %p63
      %p65 = scmp.ne.s32.totalorder %s54, %s57
      %p66 = scmp.eq.s32.totalorder %s33, 1
      %p67 = por %p65, %p66
      %p68 = scmp.ne.s32.totalorder %s57, %s58
      %p69 = scmp.eq.s32.totalorder %s33, 0
      %p70 = por %p68, %p69
      %p71 = scmp.ne.s32.totalorder %s57, %s58
      %p72 = scmp.eq.s32.totalorder %s34, 1
      %p73 = por %p71, %p72
      %p75 = scmp.ne.s32.totalorder %s58, %s74
      %p76 = scmp.eq.s32.totalorder %s34, 0
      %p77 = por %p75, %p76
      %p78 = scmp.eq.s32.totalorder %s35, 0
      %s79 = scalar_select %p78, %s36, 0
      %p80 = scmp.eq.s32.totalorder %s47, 0
      %s81 = scalar_select %p80, %s43, 0
      %s82 = ssub.s32 %s79, %s81
      %p83 = scmp.eq.s32.totalorder %s82, 0
      %s85 = sadd.s32 %s84, 1
      %s86 = scalar_select %p83, %s84, %s85
      %p89 = pneg %p83
      %p90 = scmp.eq.s32.totalorder %s28, 1
      %p91 = por %p89, %p90
      %p92 = scmp.ne.s32.totalorder %s84, %s87
      %p93 = scmp.eq.s32.totalorder %s28, 0
      %p94 = por %p92, %p93
      %p95 = scmp.ne.s32.totalorder %s84, %s87
      %p96 = scmp.eq.s32.totalorder %s33, 1
      %p97 = por %p95, %p96
      %p98 = scmp.ne.s32.totalorder %s87, %s88
      %p99 = scmp.eq.s32.totalorder %s33, 0
      %p100 = por %p98, %p99
      %p101 = scmp.ne.s32.totalorder %s87, %s88
      %p102 = scmp.eq.s32.totalorder %s34, 1
      %p103 = por %p101, %p102
      %p105 = scmp.ne.s32.totalorder %s88, %s104
      %p106 = scmp.eq.s32.totalorder %s34, 0
      %p107 = por %p105, %p106
      %p108 = scmp.eq.s32.totalorder %s35, 0
      %s109 = scalar_select %p108, %s36, 0
      %p110 = scmp.eq.s32.totalorder %s47, 0
      %s111 = scalar_select %p110, %s43, 0
      %s112 = ssub.s32 %s109, %s111
      %p113 = scmp.eq.s32.totalorder %s112, 0
      %s115 = sadd.s32 %s114, 1
      %s116 = scalar_select %p113, %s114, %s115
      %p119 = pneg %p113
      %p120 = scmp.eq.s32.totalorder %s28, 1
      %p121 = por %p119, %p120
      %p122 = scmp.ne.s32.totalorder %s114, %s117
      %p123 = scmp.eq.s32.totalorder %s28, 0
      %p124 = por %p122, %p123
      %p125 = scmp.ne.s32.totalorder %s114, %s117
      %p126 = scmp.eq.s32.totalorder %s33, 1
      %p127 = por %p125, %p126
      %p128 = scmp.ne.s32.totalorder %s117, %s118
      %p129 = scmp.eq.s32.totalorder %s33, 0
      %p130 = por %p128, %p129
      %p131 = scmp.ne.s32.totalorder %s117, %s118
      %p132 = scmp.eq.s32.totalorder %s34, 1
      %p133 = por %p131, %p132
      %p135 = scmp.ne.s32.totalorder %s118, %s134
      %p136 = scmp.eq.s32.totalorder %s34, 0
      %p137 = por %p135, %p136
      %s139 = sadd.s32 %s138, 1
      %p142 = scmp.eq.s32.totalorder %s28, 1
      %p143 = scmp.ne.s32.totalorder %s138, %s140
      %p144 = scmp.eq.s32.totalorder %s28, 0
      %p145 = por %p143, %p144
      %p146 = scmp.ne.s32.totalorder %s138, %s140
      %p147 = scmp.eq.s32.totalorder %s33, 1
      %p148 = por %p146, %p147
      %p149 = scmp.ne.s32.totalorder %s140, %s141
      %p150 = scmp.eq.s32.totalorder %s33, 0
      %p151 = por %p149, %p150
      %p152 = scmp.ne.s32.totalorder %s140, %s141
      %p153 = scmp.eq.s32.totalorder %s34, 1
      %p154 = por %p152, %p153
      %p156 = scmp.ne.s32.totalorder %s141, %s155
      %p157 = scmp.eq.s32.totalorder %s34, 0
      %p158 = por %p156, %p157
      %p159 = scmp.eq.s32.totalorder %s35, 0
      %s160 = scalar_select %p159, 0, %s36
      %p161 = scmp.eq.s32.totalorder %s47, 0
      %s162 = scalar_select %p161, 0, %s43
      %s163 = ssub.s32 %s160, %s162
      %p164 = scmp.eq.s32.totalorder %s163, 0
      %s166 = sadd.s32 %s165, 1
      %s167 = scalar_select %p164, %s165, %s166
      %p170 = pneg %p164
      %p171 = scmp.eq.s32.totalorder %s28, 1
      %p172 = por %p170, %p171
      %p173 = scmp.ne.s32.totalorder %s165, %s168
      %p174 = scmp.eq.s32.totalorder %s28, 0
      %p175 = por %p173, %p174
      %p176 = scmp.ne.s32.totalorder %s165, %s168
      %p177 = scmp.eq.s32.totalorder %s33, 1
      %p178 = por %p176, %p177
      %p179 = scmp.ne.s32.totalorder %s168, %s169
      %p180 = scmp.eq.s32.totalorder %s33, 0
      %p181 = por %p179, %p180
      %p182 = scmp.ne.s32.totalorder %s168, %s169
      %p183 = scmp.eq.s32.totalorder %s34, 1
      %p184 = por %p182, %p183
      %p186 = scmp.ne.s32.totalorder %s169, %s185
      %p187 = scmp.eq.s32.totalorder %s34, 0
      %p188 = por %p186, %p187
      %p189 = scmp.le.s32.totalorder 1, %s28
      %p190 = scmp.lt.s32.totalorder %s28, 3
      %p191 = pnand %p189, %p190
      %p192 = pneg %p191
      // Predicated region
      $region9: #{word2vec_forward.1} parent=5 // pred_check
        _
      $region10: #{word2vec_forward.1} parent=5 // pred_check_branch
        %194 = sbr.rel (%p191) target = $region12
      $region11: #{word2vec_forward.1} parent=5 // pred_region
        %s195 = ssub.s32 %s28, 1
      $region12: #{word2vec_forward.1} parent=5 // pred_fallthru
        _
      %p196 = scmp.lt.s32.totalorder %s28, 2
      // Predicated region
      $region13: #{word2vec_forward.1} parent=5 // pred_check
        %p197 = pneg %p196
      $region14: #{word2vec_forward.1} parent=5 // pred_check_branch
        %199 = sbr.rel (%p197) target = $region16
      $region15: #{word2vec_forward.1} parent=5 // pred_region
        // Predicated region
        $region17: #{word2vec_forward.1} parent=15 // pred_check
          %p200 = pneg %p64
        $region18: #{word2vec_forward.1} parent=15 // pred_check_branch
          %202 = sbr.rel (%p200) target = $region20
        $region19: #{word2vec_forward.1} parent=15 // pred_region
          %s203 = sand.u32 %s54, 1
          %s204 = scalar_lea.sflag [#allocation10], %s203
          %s205 = sand.u32 %s54, 1
          %s206 = smul.addr %s205, 256
          %s207 = scalar_lea.vmem [#allocation9], %s206
          %p208 = scmp.eq.s32.totalorder %s35, 0
          %s209 = scalar_select %p208, %s36, 0
          %s210 = smul.u32 2, %s209
          %212 = vsyncadd %s204, 0
          %s213 = smul.addr %s210, 8
          %s214 = scalar_lea.hbm %s2, %s213
          %s215 = sshll.u32 %s214, 4
          %s216 = int_to_ptr.hbm [resolvable:$true] %s215
          %s217 = sshll.u32 %s207, 4
          %s218 = int_to_ptr.vmem [resolvable:$true] %s217
          %223 = dma.hbm_to_vmem [thread:$0]  %s216, 4096, %s218, %s204, 256, 256, 16
        $region20: #{word2vec_forward.1} parent=15 // pred_fallthru
          _
        // Predicated region
        $region21: #{word2vec_forward.1} parent=15 // pred_check
          %p224 = pneg %p94
        $region22: #{word2vec_forward.1} parent=15 // pred_check_branch
          %226 = sbr.rel (%p224) target = $region24
        $region23: #{word2vec_forward.1} parent=15 // pred_region
          %p227 = scmp.eq.s32.totalorder %s35, 0
          %s228 = scalar_select %p227, %s36, 0
          %s229 = smul.u32 2, %s228
          %p230 = scmp.lt.s32.totalorder %s229, 1
          %s231 = scalar_select %p230, %s229, 1
          %s232 = scalar_lea.vmem %s3, %s231
          %p233 = scmp.eq.s32.totalorder %s35, 0
          %s234 = scalar_select %p233, %s36, 0
          %s235 = smul.u32 2, %s234
        $region24: #{word2vec_forward.1} parent=15 // pred_fallthru
          _
      $region16: #{word2vec_forward.1} parent=5 // pred_fallthru
        _
      %p236 = scmp.le.s32.totalorder 1, %s28
      %p237 = scmp.lt.s32.totalorder %s28, 3
      %p238 = pnand %p236, %p237
      %p239 = pneg %p238
      // Predicated region
      $region25: #{word2vec_forward.1} parent=5 // pred_check
        _
      $region26: #{word2vec_forward.1} parent=5 // pred_check_branch
        %241 = sbr.rel (%p238) target = $region28
      $region27: #{word2vec_forward.1} parent=5 // pred_region
        %s242 = ssub.s32 %s28, 1
        %s243 = sand.u32 %s57, 1
        %s244 = scalar_lea.sflag [#allocation10], %s243
        %s245 = sand.u32 %s57, 1
        %s246 = smul.addr %s245, 256
        %s247 = scalar_lea.vmem [#allocation9], %s246
        // Predicated region
        $region29: #{word2vec_forward.1} parent=27 // pred_check
          %p248 = pneg %p70
        $region30: #{word2vec_forward.1} parent=27 // pred_check_branch
          %250 = sbr.rel (%p248) target = $region32
        $region31: #{word2vec_forward.1} parent=27 // pred_region
          %252 = dma.done %s244, 4096
        $region32: #{word2vec_forward.1} parent=27 // pred_fallthru
          _
        %s253 = sand.u32 %s57, 1
        %s254 = scalar_lea.sflag [#allocation10], %s253
        %s255 = sand.u32 %s57, 1
        %s256 = smul.addr %s255, 256
        %s257 = scalar_lea.vmem [#allocation9], %s256
        %p258 = pneg %p70
        %p259 = pneg %p67
        %p260 = scmp.eq.s32.totalorder %s37, 0
        %s261 = scalar_select %p260, %s38, 0
        %s262 = smul.u32 2, %s261
        %p263 = scmp.lt.s32.totalorder %s262, 1
        %s264 = scalar_select %p263, %s262, 1
        %s265 = scalar_lea.vmem %s3, %s264
        %p266 = pneg %p100
        %p267 = pneg %p97
        %p268 = pneg %p130
        %p269 = pneg %p127
        %s270 = sand.u32 %s33, 1
        %s271 = scalar_lea.sflag [#allocation11], %s270
        %s272 = sand.u32 %s117, 1
        %s273 = smul.addr %s272, 16
        %s274 = scalar_lea.vmem [#allocation12], %s273
        %p275 = pneg %p151
        %p276 = pneg %p148
        %p277 = pneg %p181
        %p278 = pneg %p178
        %s279 = sand.u32 %s33, 1
        %s280 = scalar_lea.sflag [#allocation11], %s279
        %s281 = sand.u32 %s168, 1
        %s282 = smul.addr %s281, 16
        %s283 = scalar_lea.vmem [#allocation15], %s282
        %p284 = scmp.eq.s32.totalorder %s37, 0
        %s285 = scalar_select %p284, %s38, 0
        %s286 = smul.u32 2, %s285
        %p287 = scmp.eq.s32.totalorder %s37, 0
        %s288 = scalar_select %p287, %s38, 0
        %s289 = smul.u32 2, %s288
        %p290 = scmp.lt.s32.totalorder %s289, 1
        %s291 = scalar_select %p290, %s289, 1
        %s292 = scalar_lea.vmem %s3, %s291
        %p293 = scmp.eq.s32.totalorder %s37, 0
        %s294 = scalar_select %p293, %s38, 0
        %s295 = smul.u32 2, %s294
        %p296 = scmp.eq.s32.totalorder %s37, 0
        %s297 = scalar_select %p296, %s38, 0
        %s298 = smul.u32 2, %s297
        %p299 = scmp.eq.s32.totalorder %s37, 0
        %s300 = scalar_select %p299, 0, %s38
        %s301 = smul.u32 2, %s300
        %p302 = scmp.eq.s32.totalorder %s37, 0
        %p303 = scmp.eq.s32.totalorder %s38, 0
        %p304 = pnand %p302, %p303
        %p305 = pneg %p304
        // Predicated region
        $region33: #{word2vec_forward.1} parent=27 // pred_check
          _
        $region34: #{word2vec_forward.1} parent=27 // pred_check_branch
          %307 = sbr.rel (%p304) target = $region36
        $region35: #{word2vec_forward.1} parent=27 // pred_region
          %s308 = sld [smem:[#allocation8]]
          %p309 = scmp.gt.s32.totalorder %s308, 0
          %s310 = scalar_select %p309, %s308, 0
          %p311 = scmp.lt.s32.totalorder %s310, 255
          %s312 = scalar_select %p311, %s310, 255
          %s313 = sld [smem:[#allocation8 + $0x1]]
          %p314 = scmp.gt.s32.totalorder %s313, 0
          %s315 = scalar_select %p314, %s313, 0
          %p316 = scmp.lt.s32.totalorder %s315, 255
          %s317 = scalar_select %p316, %s315, 255
          %s318 = sld [smem:[#allocation8 + $0x2]]
          %p319 = scmp.gt.s32.totalorder %s318, 0
          %s320 = scalar_select %p319, %s318, 0
          %p321 = scmp.lt.s32.totalorder %s320, 255
          %s322 = scalar_select %p321, %s320, 255
          %s323 = sld [smem:[#allocation8 + $0x3]]
          %p324 = scmp.gt.s32.totalorder %s323, 0
          %s325 = scalar_select %p324, %s323, 0
          %p326 = scmp.lt.s32.totalorder %s325, 255
          %s327 = scalar_select %p326, %s325, 255
          %s328 = sld [smem:[#allocation8 + $0x4]]
          %p329 = scmp.gt.s32.totalorder %s328, 0
          %s330 = scalar_select %p329, %s328, 0
          %p331 = scmp.lt.s32.totalorder %s330, 255
          %s332 = scalar_select %p331, %s330, 255
          %s333 = sld [smem:[#allocation8 + $0x5]]
          %p334 = scmp.gt.s32.totalorder %s333, 0
          %s335 = scalar_select %p334, %s333, 0
          %p336 = scmp.lt.s32.totalorder %s335, 255
          %s337 = scalar_select %p336, %s335, 255
          %s338 = sld [smem:[#allocation8 + $0x6]]
          %p339 = scmp.gt.s32.totalorder %s338, 0
          %s340 = scalar_select %p339, %s338, 0
          %p341 = scmp.lt.s32.totalorder %s340, 255
          %s342 = scalar_select %p341, %s340, 255
          %s343 = sld [smem:[#allocation8 + $0x7]]
          %p344 = scmp.gt.s32.totalorder %s343, 0
          %s345 = scalar_select %p344, %s343, 0
          %p346 = scmp.lt.s32.totalorder %s345, 255
          %s347 = scalar_select %p346, %s345, 255
          %s348 = scalar_lea.hbm %s1, %s312
          // Predicated region
          $region37: #{word2vec_forward.1} parent=35 // pred_check
            _
          $region38: #{word2vec_forward.1} parent=35 // pred_check_branch
            %350 = sbr.rel target = $region40
          $region39: #{word2vec_forward.1} parent=35 // pred_region
            %351 = sst [smem:[#allocation18]] [#allocation17]
            %352 = sst [smem:[#allocation19]] [#allocation16]
          $region40: #{word2vec_forward.1} parent=35 // pred_fallthru
            _
          %354 = shalt.err (0)
          %s356 = sshll.u32 %s348, 4
          %s357 = int_to_ptr.hbm [resolvable:$true] %s356
          %s358 = sshll.u32 [#allocation2], 4
          %s359 = int_to_ptr.vmem [resolvable:$true] %s358
          %361 = dma.hbm_to_vmem [thread:$0]  %s357, 16, %s359, [#allocation6]
          %s362 = scalar_lea.hbm %s1, %s317
          %s363 = scalar_lea.vmem [#allocation2], 1
          %s364 = scalar_lea.sflag [#allocation6], 1
          // Predicated region
          $region41: #{word2vec_forward.1} parent=35 // pred_check
            _
          $region42: #{word2vec_forward.1} parent=35 // pred_check_branch
            %366 = sbr.rel target = $region44
          $region43: #{word2vec_forward.1} parent=35 // pred_region
            %367 = sst [smem:[#allocation18]] [#allocation21]
            %368 = sst [smem:[#allocation19]] [#allocation20]
          $region44: #{word2vec_forward.1} parent=35 // pred_fallthru
            _
          %370 = shalt.err (0)
          %s372 = sshll.u32 %s362, 4
          %s373 = int_to_ptr.hbm [resolvable:$true] %s372
          %s374 = sshll.u32 %s363, 4
          %s375 = int_to_ptr.vmem [resolvable:$true] %s374
          %377 = dma.hbm_to_vmem [thread:$0]  %s373, 16, %s375, %s364
          %s378 = scalar_lea.hbm %s1, %s322
          %s379 = scalar_lea.vmem [#allocation2], 2
          %s380 = scalar_lea.sflag [#allocation6], 2
          // Predicated region
          $region45: #{word2vec_forward.1} parent=35 // pred_check
            _
          $region46: #{word2vec_forward.1} parent=35 // pred_check_branch
            %382 = sbr.rel target = $region48
          $region47: #{word2vec_forward.1} parent=35 // pred_region
            %383 = sst [smem:[#allocation18]] [#allocation23]
            %384 = sst [smem:[#allocation19]] [#allocation22]
          $region48: #{word2vec_forward.1} parent=35 // pred_fallthru
            _
          %386 = shalt.err (0)
          %s388 = sshll.u32 %s378, 4
          %s389 = int_to_ptr.hbm [resolvable:$true] %s388
          %s390 = sshll.u32 %s379, 4
          %s391 = int_to_ptr.vmem [resolvable:$true] %s390
          %393 = dma.hbm_to_vmem [thread:$0]  %s389, 16, %s391, %s380
          %s394 = scalar_lea.hbm %s1, %s327
          %s395 = scalar_lea.vmem [#allocation2], 3
          %s396 = scalar_lea.sflag [#allocation6], 3
          // Predicated region
          $region49: #{word2vec_forward.1} parent=35 // pred_check
            _
          $region50: #{word2vec_forward.1} parent=35 // pred_check_branch
            %398 = sbr.rel target = $region52
          $region51: #{word2vec_forward.1} parent=35 // pred_region
            %399 = sst [smem:[#allocation18]] [#allocation25]
            %400 = sst [smem:[#allocation19]] [#allocation24]
          $region52: #{word2vec_forward.1} parent=35 // pred_fallthru
            _
          %402 = shalt.err (0)
          %s404 = sshll.u32 %s394, 4
          %s405 = int_to_ptr.hbm [resolvable:$true] %s404
          %s406 = sshll.u32 %s395, 4
          %s407 = int_to_ptr.vmem [resolvable:$true] %s406
          %409 = dma.hbm_to_vmem [thread:$0]  %s405, 16, %s407, %s396
          %s410 = scalar_lea.hbm %s1, %s332
          %s411 = scalar_lea.vmem [#allocation2], 4
          %s412 = scalar_lea.sflag [#allocation6], 4
          // Predicated region
          $region53: #{word2vec_forward.1} parent=35 // pred_check
            _
          $region54: #{word2vec_forward.1} parent=35 // pred_check_branch
            %414 = sbr.rel target = $region56
          $region55: #{word2vec_forward.1} parent=35 // pred_region
            %415 = sst [smem:[#allocation18]] [#allocation27]
            %416 = sst [smem:[#allocation19]] [#allocation26]
          $region56: #{word2vec_forward.1} parent=35 // pred_fallthru
            _
          %418 = shalt.err (0)
          %s420 = sshll.u32 %s410, 4
          %s421 = int_to_ptr.hbm [resolvable:$true] %s420
          %s422 = sshll.u32 %s411, 4
          %s423 = int_to_ptr.vmem [resolvable:$true] %s422
          %425 = dma.hbm_to_vmem [thread:$0]  %s421, 16, %s423, %s412
          %s426 = scalar_lea.hbm %s1, %s337
          %s427 = scalar_lea.vmem [#allocation2], 5
          %s428 = scalar_lea.sflag [#allocation6], 5
          // Predicated region
          $region57: #{word2vec_forward.1} parent=35 // pred_check
            _
          $region58: #{word2vec_forward.1} parent=35 // pred_check_branch
            %430 = sbr.rel target = $region60
          $region59: #{word2vec_forward.1} parent=35 // pred_region
            %431 = sst [smem:[#allocation18]] [#allocation29]
            %432 = sst [smem:[#allocation19]] [#allocation28]
          $region60: #{word2vec_forward.1} parent=35 // pred_fallthru
            _
          %434 = shalt.err (0)
          %s436 = sshll.u32 %s426, 4
          %s437 = int_to_ptr.hbm [resolvable:$true] %s436
          %s438 = sshll.u32 %s427, 4
          %s439 = int_to_ptr.vmem [resolvable:$true] %s438
          %441 = dma.hbm_to_vmem [thread:$0]  %s437, 16, %s439, %s428
          %s442 = scalar_lea.hbm %s1, %s342
          %s443 = scalar_lea.vmem [#allocation2], 6
          %s444 = scalar_lea.sflag [#allocation6], 6
          // Predicated region
          $region61: #{word2vec_forward.1} parent=35 // pred_check
            _
          $region62: #{word2vec_forward.1} parent=35 // pred_check_branch
            %446 = sbr.rel target = $region64
          $region63: #{word2vec_forward.1} parent=35 // pred_region
            %447 = sst [smem:[#allocation18]] [#allocation31]
            %448 = sst [smem:[#allocation19]] [#allocation30]
          $region64: #{word2vec_forward.1} parent=35 // pred_fallthru
            _
          %450 = shalt.err (0)
          %s452 = sshll.u32 %s442, 4
          %s453 = int_to_ptr.hbm [resolvable:$true] %s452
          %s454 = sshll.u32 %s443, 4
          %s455 = int_to_ptr.vmem [resolvable:$true] %s454
          %457 = dma.hbm_to_vmem [thread:$0]  %s453, 16, %s455, %s444
          %s458 = scalar_lea.hbm %s1, %s347
          %s459 = scalar_lea.vmem [#allocation2], 7
          %s460 = scalar_lea.sflag [#allocation6], 7
          // Predicated region
          $region65: #{word2vec_forward.1} parent=35 // pred_check
            _
          $region66: #{word2vec_forward.1} parent=35 // pred_check_branch
            %462 = sbr.rel target = $region68
          $region67: #{word2vec_forward.1} parent=35 // pred_region
            %463 = sst [smem:[#allocation18]] [#allocation33]
            %464 = sst [smem:[#allocation19]] [#allocation32]
          $region68: #{word2vec_forward.1} parent=35 // pred_fallthru
            _
          %466 = shalt.err (0)
          %s468 = sshll.u32 %s458, 4
          %s469 = int_to_ptr.hbm [resolvable:$true] %s468
          %s470 = sshll.u32 %s459, 4
          %s471 = int_to_ptr.vmem [resolvable:$true] %s470
          %473 = dma.hbm_to_vmem [thread:$0]  %s469, 16, %s471, %s460
          %s474 = smul.u32 1, 1
          %s475 = sshll.u32 %s474, 4
          %476 = dma.done [#allocation6], %s475
          %s477 = sshll.u32 %s474, 4
          %478 = dma.done %s364, %s477
          %s479 = sshll.u32 %s474, 4
          %480 = dma.done %s380, %s479
          %s481 = sshll.u32 %s474, 4
          %482 = dma.done %s396, %s481
          %s483 = sshll.u32 %s474, 4
          %484 = dma.done %s412, %s483
          %s485 = sshll.u32 %s474, 4
          %486 = dma.done %s428, %s485
          %s487 = sshll.u32 %s474, 4
          %488 = dma.done %s444, %s487
          %s489 = sshll.u32 %s474, 4
          %490 = dma.done %s460, %s489
          %v491 = vld [vmem:[#allocation2] sm:$0xff]
          %492 = vst [vmem:[#allocation13] sm:$0xff] %v491
          %vm493 = vcmask 7168
          %494 = vst.msk [vmem:[#allocation4] sm:$0xff] %vm493, -inf
          %495 = vst.msk [vmem:[#allocation5] sm:$0xff] %vm493, 0.0
        $region36: #{word2vec_forward.1} parent=27 // pred_fallthru
          _
        // Predicated region
        $region69: #{word2vec_forward.1} parent=27 // pred_check
          %p496 = pneg %p302
        $region70: #{word2vec_forward.1} parent=27 // pred_check_branch
          %498 = sbr.rel (%p496) target = $region72
        $region71: #{word2vec_forward.1} parent=27 // pred_region
          %v499 = vld [vmem:[#allocation2] sm:$0xff]
          %v500 = vld [vmem:[%s247] sm:$0xff]
          %v501 = vld [vmem:[%s247 + $0x8] sm:$0xff]
          %v502 = vld [vmem:[%s247 + $0x10] sm:$0xff]
          %v503 = vld [vmem:[%s247 + $0x18] sm:$0xff]
          %v504 = vld [vmem:[%s247 + $0x20] sm:$0xff]
          %v505 = vld [vmem:[%s247 + $0x28] sm:$0xff]
          %v506 = vld [vmem:[%s247 + $0x30] sm:$0xff]
          %v507 = vld [vmem:[%s247 + $0x38] sm:$0xff]
          %v508 = vld [vmem:[%s247 + $0x40] sm:$0xff]
          %v509 = vld [vmem:[%s247 + $0x48] sm:$0xff]
          %v510 = vld [vmem:[%s247 + $0x50] sm:$0xff]
          %v511 = vld [vmem:[%s247 + $0x58] sm:$0xff]
          %v512 = vld [vmem:[%s247 + $0x60] sm:$0xff]
          %v513 = vld [vmem:[%s247 + $0x68] sm:$0xff]
          %v514 = vld [vmem:[%s247 + $0x70] sm:$0xff]
          %v515 = vld [vmem:[%s247 + $0x78] sm:$0xff]
          %v516 = vld [vmem:[%s247 + $0x80] sm:$0xff]
          %v517 = vld [vmem:[%s247 + $0x88] sm:$0xff]
          %v518 = vld [vmem:[%s247 + $0x90] sm:$0xff]
          %v519 = vld [vmem:[%s247 + $0x98] sm:$0xff]
          %v520 = vld [vmem:[%s247 + $0xa0] sm:$0xff]
          %v521 = vld [vmem:[%s247 + $0xa8] sm:$0xff]
          %v522 = vld [vmem:[%s247 + $0xb0] sm:$0xff]
          %v523 = vld [vmem:[%s247 + $0xb8] sm:$0xff]
          %v524 = vld [vmem:[%s247 + $0xc0] sm:$0xff]
          %v525 = vld [vmem:[%s247 + $0xc8] sm:$0xff]
          %v526 = vld [vmem:[%s247 + $0xd0] sm:$0xff]
          %v527 = vld [vmem:[%s247 + $0xd8] sm:$0xff]
          %v528 = vld [vmem:[%s247 + $0xe0] sm:$0xff]
          %v529 = vld [vmem:[%s247 + $0xe8] sm:$0xff]
          %v530 = vld [vmem:[%s247 + $0xf0] sm:$0xff]
          %v531 = vld [vmem:[%s247 + $0xf8] sm:$0xff]
          %v532 = vld [vmem:[%s292] sm:$0x3]
          %v534 = vperm.slane %v532, 0
          %v535 = vperm.slane %v532, 1
          %538 = vmatpush.msra.mxu0 %v530
          %539 = vmatpush.msra.mxu0 %v528
          %540 = vmatpush.msra.mxu0 %v526
          %541 = vmatpush.msra.mxu0 %v524
          %542 = vmatpush.msra.mxu0 %v522
          %543 = vmatpush.msra.mxu0 %v520
          %544 = vmatpush.msra.mxu0 %v518
          %545 = vmatpush.msra.mxu0 %v516
          %546 = vmatpush.msra.mxu0 %v514
          %547 = vmatpush.msra.mxu0 %v512
          %548 = vmatpush.msra.mxu0 %v510
          %549 = vmatpush.msra.mxu0 %v508
          %550 = vmatpush.msra.mxu0 %v506
          %551 = vmatpush.msra.mxu0 %v504
          %552 = vmatpush.msra.mxu0 %v502
          %553 = vmatpush.msra.mxu0 %v500
          %554 = vmatmul.f32.gmra.mxu0 %v499
          %v555 = vpop.f32.mrf.mxu0
          %v556 = vadd.f32 %v534, %v555
          %557 = vdwg.mxu0
          %558 = vmatpush.msra.mxu0 %v531
          %559 = vmatpush.msra.mxu0 %v529
          %560 = vmatpush.msra.mxu0 %v527
          %561 = vmatpush.msra.mxu0 %v525
          %562 = vmatpush.msra.mxu0 %v523
          %563 = vmatpush.msra.mxu0 %v521
          %564 = vmatpush.msra.mxu0 %v519
          %565 = vmatpush.msra.mxu0 %v517
          %566 = vmatpush.msra.mxu0 %v515
          %567 = vmatpush.msra.mxu0 %v513
          %568 = vmatpush.msra.mxu0 %v511
          %569 = vmatpush.msra.mxu0 %v509
          %570 = vmatpush.msra.mxu0 %v507
          %571 = vmatpush.msra.mxu0 %v505
          %572 = vmatpush.msra.mxu0 %v503
          %573 = vmatpush.msra.mxu0 %v501
          %574 = vmatmul.f32.gmra.mxu0 %v499
          %v575 = vpop.f32.mrf.mxu0
          %v576 = vadd.f32 %v535, %v575
          %577 = vdwg.mxu0
          %578 = vst [vmem:[%s274] sm:$0xff] %v556
          %579 = vst [vmem:[%s274 + $0x8] sm:$0xff] %v576
          %s580 = smul.u32 %s38, 2
          %s581 = smul.addr %s580, 8
          %s582 = scalar_lea.vmem [#allocation3], %s581
          %583 = vst [vmem:[%s582] sm:$0xff] %v556
          %584 = vst [vmem:[%s582 + $0x8] sm:$0xff] %v576
          %v585 = vld [vmem:[#allocation4] sm:$0xff]
          %v586 = vmax.f32 %v556, %v576
          %587 = vmax.xlane.f32.xlu0 %v586
          %v588 = vpop.xlane.xlu0 %587
          %v589 = vmax.f32 %v585, %v588
          %v590 = vsub.f32 %v585, %v589
          %v591 = vmul.f32 %v590, 1.442695
          %v592 = vpow.pop %v591
          %v593 = vld [vmem:[#allocation5] sm:$0xff]
          %v594 = vmul.f32 %v592, %v593
          %596 = vset.pattern.permute.xlu0 0
          %597 = vperm.xlu0 %596, %v589
          %v598 = vpop.permute.xlu0 %597
          %v600 = vsub.f32 %v556, %v598
          %v601 = vsub.f32 %v576, %v598
          %v602 = vmul.f32 %v600, 1.442695
          %v603 = vpow.pop %v602
          %v604 = vmul.f32 %v601, 1.442695
          %v605 = vpow.pop %v604
          %v606 = vadd.f32 %v603, %v605
          %607 = vadd.xlane.f32.xlu0 %v606
          %v608 = vpop.xlane.xlu0 %607
          %v609 = vadd.f32 %v594, %v608
          %vm610 = vcmask 7168
          %611 = vst.msk [vmem:[#allocation5] sm:$0xff] %vm610, %v609
          %612 = vst.msk [vmem:[#allocation4] sm:$0xff] %vm610, %v589
        $region72: #{word2vec_forward.1} parent=27 // pred_fallthru
          _
        %p613 = scmp.eq.s32.totalorder %s37, 1
        // Predicated region
        $region73: #{word2vec_forward.1} parent=27 // pred_check
          %p614 = pneg %p613
        $region74: #{word2vec_forward.1} parent=27 // pred_check_branch
          %616 = sbr.rel (%p614) target = $region76
        $region75: #{word2vec_forward.1} parent=27 // pred_region
          %v617 = vld [vmem:[#allocation5] sm:$0xff]
          %v618 = vrcp.pop %v617
          %v619 = vmul.f32 %v617, %v618
          %v620 = vsub.f32 1.0, %v619
          %v621 = vmul.f32 %v618, %v620
          %v622 = vadd.f32 %v618, %v621
          %vm623 = vweird.f32 %v617
          %vm624 = vweird.f32 %v618
          %vm625 = vmor %vm623, %vm624
          %v626 = vsel %vm625, %v618, %v622
          %v627 = vand.u32 2147483647, %v617
          %vm628 = vcmp.eq.f32.partialorder %v627, 8.507059e+37
          %v629 = vand.u32 %v617, 2147483648
          %v630 = vor.u32 1.1754944e-38, %v629
          %v631 = vsel %vm628, %v630, %v626
          %s632 = smul.u32 %s38, 2
          %s633 = smul.addr %s632, 8
          %s634 = scalar_lea.vmem [#allocation3], %s633
          %v635 = vld [vmem:[%s634] sm:$0xff]
          %v636 = vld [vmem:[%s634 + $0x8] sm:$0xff]
          %v637 = vld [vmem:[#allocation4] sm:$0xff]
          %639 = vset.pattern.permute.xlu0 0
          %640 = vperm.xlu0 %639, %v637
          %v641 = vpop.permute.xlu0 %640
          %v643 = vsub.f32 %v635, %v641
          %v644 = vsub.f32 %v636, %v641
          %v645 = vmul.f32 %v643, 1.442695
          %v646 = vpow.pop %v645
          %v647 = vmul.f32 %v644, 1.442695
          %v648 = vpow.pop %v647
          %650 = vset.pattern.permute.xlu0 0
          %651 = vperm.xlu0 %650, %v631
          %v652 = vpop.permute.xlu0 %651
          %v654 = vmul.f32 %v646, %v652
          %v655 = vmul.f32 %v648, %v652
          %656 = vst [vmem:[%s283] sm:$0xff] %v654
          %657 = vst [vmem:[%s283 + $0x8] sm:$0xff] %v655
        $region76: #{word2vec_forward.1} parent=27 // pred_fallthru
          _
        %s658 = sand.u32 %s33, 1
        %s659 = scalar_lea.sflag [#allocation11], %s658
        %s660 = sand.u32 %s117, 1
        %s661 = smul.addr %s660, 16
        %s662 = scalar_lea.vmem [#allocation12], %s661
        %s663 = sand.u32 %s33, 1
        %s664 = scalar_lea.sflag [#allocation11], %s663
        %s665 = sand.u32 %s168, 1
        %s666 = smul.addr %s665, 16
        %s667 = scalar_lea.vmem [#allocation15], %s666
        // Predicated region
        $region77: #{word2vec_forward.1} parent=27 // pred_check
          %p668 = pneg %p127
        $region78: #{word2vec_forward.1} parent=27 // pred_check_branch
          %670 = sbr.rel (%p668) target = $region80
        $region79: #{word2vec_forward.1} parent=27 // pred_region
          %p671 = scmp.eq.s32.totalorder %s37, 0
          %s672 = scalar_select %p671, %s38, 0
          %s673 = smul.u32 2, %s672
          %675 = vsyncadd %s659, 0
          %s676 = smul.addr %s673, 8
          %s677 = scalar_lea.hbm %s4, %s676
          %s679 = sshll.u32 %s662, 4
          %s680 = int_to_ptr.vmem [resolvable:$true] %s679
          %s681 = sshll.u32 %s677, 4
          %s682 = int_to_ptr.hbm [resolvable:$true] %s681
          %684 = dma.vmem_to_hbm [thread:$0]  %s680, 256, %s682, %s659
        $region80: #{word2vec_forward.1} parent=27 // pred_fallthru
          _
        // Predicated region
        $region81: #{word2vec_forward.1} parent=27 // pred_check
          %p685 = pneg %p148
        $region82: #{word2vec_forward.1} parent=27 // pred_check_branch
          %687 = sbr.rel (%p685) target = $region84
        $region83: #{word2vec_forward.1} parent=27 // pred_region
          %689 = vsyncadd [#allocation14], 0
          %s691 = sshll.u32 [#allocation13], 4
          %s692 = int_to_ptr.vmem [resolvable:$true] %s691
          %s693 = sshll.u32 %s5, 4
          %s694 = int_to_ptr.hbm [resolvable:$true] %s693
          %696 = dma.vmem_to_hbm [thread:$0]  %s692, 128, %s694, [#allocation14]
        $region84: #{word2vec_forward.1} parent=27 // pred_fallthru
          _
        // Predicated region
        $region85: #{word2vec_forward.1} parent=27 // pred_check
          %p697 = pneg %p178
        $region86: #{word2vec_forward.1} parent=27 // pred_check_branch
          %699 = sbr.rel (%p697) target = $region88
        $region87: #{word2vec_forward.1} parent=27 // pred_region
          %p700 = scmp.eq.s32.totalorder %s37, 0
          %s701 = scalar_select %p700, 0, %s38
          %s702 = smul.u32 2, %s701
          %704 = vsyncadd %s664, 0
          %s705 = smul.addr %s702, 8
          %s706 = scalar_lea.hbm %s6, %s705
          %s708 = sshll.u32 %s667, 4
          %s709 = int_to_ptr.vmem [resolvable:$true] %s708
          %s710 = sshll.u32 %s706, 4
          %s711 = int_to_ptr.hbm [resolvable:$true] %s710
          %713 = dma.vmem_to_hbm [thread:$0]  %s709, 256, %s711, %s664
        $region88: #{word2vec_forward.1} parent=27 // pred_fallthru
          _
        // Predicated region
        $region89: #{word2vec_forward.1} parent=27 // pred_check
          %p714 = pneg %p148
        $region90: #{word2vec_forward.1} parent=27 // pred_check_branch
          %716 = sbr.rel (%p714) target = $region92
        $region91: #{word2vec_forward.1} parent=27 // pred_region
          %718 = dma.done [#allocation14], 128
        $region92: #{word2vec_forward.1} parent=27 // pred_fallthru
          _
      $region28: #{word2vec_forward.1} parent=5 // pred_fallthru
        _
      %p719 = scmp.le.s32.totalorder 2, %s28
      // Predicated region
      $region93: #{word2vec_forward.1} parent=5 // pred_check
        %p720 = pneg %p719
      $region94: #{word2vec_forward.1} parent=5 // pred_check_branch
        %722 = sbr.rel (%p720) target = $region96
      $region95: #{word2vec_forward.1} parent=5 // pred_region
        %s723 = ssub.s32 %s28, 2
        // Predicated region
        $region97: #{word2vec_forward.1} parent=95 // pred_check
          %p724 = pneg %p133
        $region98: #{word2vec_forward.1} parent=95 // pred_check_branch
          %726 = sbr.rel (%p724) target = $region100
        $region99: #{word2vec_forward.1} parent=95 // pred_region
          %s727 = sand.u32 %s34, 1
          %s728 = scalar_lea.sflag [#allocation11], %s727
          %s729 = sand.u32 %s118, 1
          %s730 = smul.addr %s729, 16
          %s731 = scalar_lea.vmem [#allocation12], %s730
          %733 = dma.done %s728, 256
        $region100: #{word2vec_forward.1} parent=95 // pred_fallthru
          _
        // Predicated region
        $region101: #{word2vec_forward.1} parent=95 // pred_check
          %p734 = pneg %p184
        $region102: #{word2vec_forward.1} parent=95 // pred_check_branch
          %736 = sbr.rel (%p734) target = $region104
        $region103: #{word2vec_forward.1} parent=95 // pred_region
          %s737 = sand.u32 %s34, 1
          %s738 = scalar_lea.sflag [#allocation11], %s737
          %s739 = sand.u32 %s169, 1
          %s740 = smul.addr %s739, 16
          %s741 = scalar_lea.vmem [#allocation15], %s740
          %743 = dma.done %s738, 256
        $region104: #{word2vec_forward.1} parent=95 // pred_fallthru
          _
      $region96: #{word2vec_forward.1} parent=5 // pred_fallthru
        _
    $region6: #{word2vec_forward.1} parent=1 // loop_footer
      %s32 = sadd.s32 1, %s28
    $region7: #{word2vec_forward.1} parent=1 // loop_footer_branch
      %27 = sbr.rel target = $region3
    $region8: #{word2vec_forward.1} parent=1 // loop_exit
      _
    %744 = vsyncpa [#allocation10], 1
    %s745 = scalar_lea.sflag [#allocation10], 1
    %746 = vsyncpa %s745, 1
    %747 = vsyncpa [#allocation11], 1
    %s748 = scalar_lea.sflag [#allocation11], 1
    %749 = vsyncpa %s748, 1
    %750 = vsyncpa [#allocation14], 1
  %751 = vsyncmov [#allocation6]
  %s752 = vpop.sfrf %751
  %p753 = scmp.eq.s32.totalorder %s752, 0
  %p754 = pneg %p753
  %756 = shalt.err (%p754)
  %s757 = scalar_lea.sflag [#allocation6], 1
  %758 = vsyncmov %s757
  %s759 = vpop.sfrf %758
  %p760 = scmp.eq.s32.totalorder %s759, 0
  %p761 = pneg %p760
  %763 = shalt.err (%p761)
  %s764 = scalar_lea.sflag [#allocation6], 2
  %765 = vsyncmov %s764
  %s766 = vpop.sfrf %765
  %p767 = scmp.eq.s32.totalorder %s766, 0
  %p768 = pneg %p767
  %770 = shalt.err (%p768)
  %s771 = scalar_lea.sflag [#allocation6], 3
  %772 = vsyncmov %s771
  %s773 = vpop.sfrf %772
  %p774 = scmp.eq.s32.totalorder %s773, 0
  %p775 = pneg %p774
  %777 = shalt.err (%p775)
  %s778 = scalar_lea.sflag [#allocation6], 4
  %779 = vsyncmov %s778
  %s780 = vpop.sfrf %779
  %p781 = scmp.eq.s32.totalorder %s780, 0
  %p782 = pneg %p781
  %784 = shalt.err (%p782)
  %s785 = scalar_lea.sflag [#allocation6], 5
  %786 = vsyncmov %s785
  %s787 = vpop.sfrf %786
  %p788 = scmp.eq.s32.totalorder %s787, 0
  %p789 = pneg %p788
  %791 = shalt.err (%p789)
  %s792 = scalar_lea.sflag [#allocation6], 6
  %793 = vsyncmov %s792
  %s794 = vpop.sfrf %793
  %p795 = scmp.eq.s32.totalorder %s794, 0
  %p796 = pneg %p795
  %798 = shalt.err (%p796)
  %s799 = scalar_lea.sflag [#allocation6], 7
  %800 = vsyncmov %s799
  %s801 = vpop.sfrf %800
  %p802 = scmp.eq.s32.totalorder %s801, 0
  %p803 = pneg %p802
  %805 = shalt.err (%p803)

</llo_original>
